<compile_context>
chip_gen: v7x
topology: tpu7x:2x2x1
jax: 0.10.0
libtpu: 0.0.40
codegen_flags: <defaults>
</compile_context>

<pallas_src>
import jax
import jax.numpy as jnp
from jax.experimental import pallas as pl
from jax.experimental.pallas import tpu as pltpu


def _upsample_noc_kernel(x_ref, fm_ref, rmat_ref, dmat_ref,
                         w_eff_ref, w2b_ref, b_eff_ref, out_ref):
    # x_ref   : (1, C, rp,  W)    low-res input rows
    # fm_ref  : (1, C, 2rp, 2W)   skip-connection rows
    # rmat_ref: (W, 2W)           column-doubling 0/1 matrix (VMEM)
    # dmat_ref: (2rp, rp)         row-doubling 0/1 matrix    (VMEM)
    # w_eff_ref: (C, C) SMEM      folded conv weight  (out, in)
    # w2b_ref : (C, C)  SMEM      conv2 weight on the skip path (out, in)
    # b_eff_ref: (C,)   SMEM      folded bias
    # out_ref : (1, C, 2rp, 2W)
    C = x_ref.shape[1]
    xb = x_ref[0]          # (C, rp, W)
    fmb = fm_ref[0]        # (C, 2rp, 2W)
    R = rmat_ref[...]      # (W, 2W)
    D = dmat_ref[...]      # (2rp, rp)

    for o in range(C):     # C is small; unrolled at trace time
        # folded (conv2a . conv1) applied at LOW resolution           (VPU)
        y = w_eff_ref[o, 0] * xb[0]
        for c in range(1, C):
            y = y + w_eff_ref[o, c] * xb[c]
        # nearest-neighbour 2x upsample via two small constant matmuls (MXU)
        up = jnp.dot(D, jnp.dot(y, R, preferred_element_type=jnp.float32),
                     preferred_element_type=jnp.float32)       # (2rp, 2W)
        # second half of conv2 on the skip connection                 (VPU)
        z = w2b_ref[o, 0] * fmb[0]
        for c in range(1, C):
            z = z + w2b_ref[o, c] * fmb[c]
        out_ref[0, o] = (up + z + b_eff_ref[o]).astype(out_ref.dtype)


def _choose_row_tile(N, C, H, W, budget_bytes):
    """Largest low-res row-band rp (divisor of H, rp==H or rp%8==0) that fits
    the VMEM budget when double-buffered; prefers >=4 grid steps for megacore."""
    cands = [d for d in range(H, 0, -1) if H % d == 0 and (d == H or d % 8 == 0)]

    def block_bytes(rp):
        x_blk = 4 * C * rp * W
        fm_blk = 4 * C * (2 * rp) * (2 * W)
        rep = 4 * (2 * rp * rp + 2 * W * W)
        return 2 * (x_blk + 2 * fm_blk) + rep        # in + out, double-buffered

    fitting = [rp for rp in cands if block_bytes(rp) <= budget_bytes]
    if not fitting:
        return cands[-1]
    for rp in fitting:                               # largest first
        if N * (H // rp) >= 4:
            return rp
    return fitting[0]


def upsample_noc_forward(x, feature_map, w1, b1, w2, b2,
                         *, vmem_budget_bytes=24 * 1024 * 1024):
    """Pallas equivalent of UpSample_noc.forward.

    x           : (N, C, H, W)    float32, NCHW
    feature_map : (N, C, 2H, 2W)  float32, NCHW
    w1 : (C, C)   conv1 1x1 weight, PyTorch (out_ch, in_ch) layout
    b1 : (C,)     conv1 bias
    w2 : (C, 2C)  conv2 1x1 weight, PyTorch (out_ch, in_ch) layout
    b2 : (C,)     conv2 bias
    returns (N, C, 2H, 2W) float32
    """
    N, C, H, W = x.shape
    H2, W2 = 2 * H, 2 * W
    assert feature_map.shape == (N, C, H2, W2)
    assert w1.shape == (C, C) and w2.shape == (C, 2 * C)

    x = x.astype(jnp.float32)
    feature_map = feature_map.astype(jnp.float32)
    w1 = w1.astype(jnp.float32)
    b1 = b1.astype(jnp.float32)
    w2 = w2.astype(jnp.float32)
    b2 = b2.astype(jnp.float32)

    # Fold conv1 into the first half of conv2 (both 1x1):
    #   conv2([conv1(up) ; fm]) == W_eff @ up + W2b @ fm + b_eff
    w2a, w2b = w2[:, :C], w2[:, C:]
    w_eff = w2a @ w1                    # (C, C), (out, in)
    b_eff = w2a @ b1 + b2               # (C,)

    rp = _choose_row_tile(N, C, H, W, vmem_budget_bytes)

    # 0/1 replication operators for the nearest 2x upsample (tiny, VMEM-resident).
    R = (jnp.arange(W2)[None, :] // 2 == jnp.arange(W)[:, None]).astype(jnp.float32)       # (W, 2W)
    D = (jnp.arange(2 * rp)[:, None] // 2 == jnp.arange(rp)[None, :]).astype(jnp.float32)  # (2rp, rp)

    grid = (N, H // rp)

    out = pl.pallas_call(
        _upsample_noc_kernel,
        out_shape=jax.ShapeDtypeStruct((N, C, H2, W2), jnp.float32),
        grid_spec=pltpu.PrefetchScalarGridSpec(
            num_scalar_prefetch=0,
            grid=grid,
            in_specs=[
                pl.BlockSpec((1, C, rp, W), lambda n, i: (n, 0, i, 0)),        # x row band
                pl.BlockSpec((1, C, 2 * rp, W2), lambda n, i: (n, 0, i, 0)),   # fm row band
                pl.BlockSpec((W, W2), lambda n, i: (0, 0)),                    # R (resident)
                pl.BlockSpec((2 * rp, rp), lambda n, i: (0, 0)),               # D (resident)
                pl.BlockSpec(memory_space=pltpu.MemorySpace.SMEM),             # w_eff
                pl.BlockSpec(memory_space=pltpu.MemorySpace.SMEM),             # w2b
                pl.BlockSpec(memory_space=pltpu.MemorySpace.SMEM),             # b_eff
            ],
            out_specs=pl.BlockSpec((1, C, 2 * rp, W2), lambda n, i: (n, 0, i, 0)),
        ),
        compiler_params=pltpu.CompilerParams(
            dimension_semantics=("parallel", "parallel"),
            vmem_limit_bytes=48 * 1024 * 1024,   # > 32MiB scoped default, safe on v7x
        ),
    )(x, feature_map, R, D, w_eff, w2b, b_eff)
    return out


def _reference(x, feature_map, w1, b1, w2, b2):
    """Pure-JAX reference mirroring the PyTorch forward (NCHW, (out,in) weights)."""
    up = jnp.repeat(jnp.repeat(x, 2, axis=2), 2, axis=3)
    out = jnp.einsum("oc,nchw->nohw", w1, up) + b1[None, :, None, None]
    cat = jnp.concatenate([out, feature_map], axis=1)
    out2 = jnp.einsum("ok,nkhw->nohw", w2, cat) + b2[None, :, None, None]
    return out2


if __name__ == "__main__":
    key = jax.random.PRNGKey(0)
    k_x, k_f, k_w1, k_b1, k_w2, k_b2 = jax.random.split(key, 6)

    N, C, H, W = 2, 4, 16, 16
    x = jax.random.normal(k_x, (N, C, H, W), dtype=jnp.float32)
    feature_map = jax.random.normal(k_f, (N, C, 2 * H, 2 * W), dtype=jnp.float32)

    # PyTorch-layout parameters: conv1 weight (C, C), conv2 weight (C, 2C).
    w1 = 0.1 * jax.random.normal(k_w1, (C, C), dtype=jnp.float32)
    b1 = 0.1 * jax.random.normal(k_b1, (C,), dtype=jnp.float32)
    w2 = 0.1 * jax.random.normal(k_w2, (C, 2 * C), dtype=jnp.float32)
    b2 = 0.1 * jax.random.normal(k_b2, (C,), dtype=jnp.float32)

    out = jax.block_until_ready(upsample_noc_forward(x, feature_map, w1, b1, w2, b2))
    ref = _reference(x, feature_map, w1, b1, w2, b2)

    assert out.shape == (N, C, 2 * H, 2 * W)
    assert jnp.allclose(out, ref, atol=1e-4, rtol=1e-4), float(jnp.max(jnp.abs(out - ref)))
    print("KERNEL_OK")
</pallas_src>

<mosaic_0001>
module attributes {stable_mosaic.version = 11 : i64} {
  func.func @_upsample_noc_kernel(%arg0: i32, %arg1: i32, %arg2: memref<1x4x8x16xf32, #tpu.memory_space<vmem>>, %arg3: memref<1x4x16x32xf32, #tpu.memory_space<vmem>>, %arg4: memref<16x32xf32, #tpu.memory_space<vmem>>, %arg5: memref<16x8xf32, #tpu.memory_space<vmem>>, %arg6: memref<4x4xf32, #tpu.memory_space<smem>>, %arg7: memref<4x4xf32, #tpu.memory_space<smem>>, %arg8: memref<4xf32, #tpu.memory_space<smem>>, %arg9: memref<1x4x16x32xf32, #tpu.memory_space<vmem>>) attributes {dimension_semantics = [#tpu.dimension_semantics<parallel>, #tpu.dimension_semantics<parallel>], iteration_bounds = array<i64: 2, 2>, scalar_prefetch = 0 : i64, scratch_operands = 0 : i64, tpu.core_type = #tpu.core_type<tc>, window_params = [{transform_indices = @transform_0, window_bounds = array<i64: 1, 4, 8, 16>}, {transform_indices = @transform_1, window_bounds = array<i64: 1, 4, 16, 32>}, {pipeline_mode = #tpu.pipeline_mode<synchronous>, transform_indices = @transform_2, window_bounds = array<i64: 16, 32>}, {pipeline_mode = #tpu.pipeline_mode<synchronous>, transform_indices = @transform_3, window_bounds = array<i64: 16, 8>}, {transform_indices = @transform_4, window_bounds = array<i64: 4, 4>}, {transform_indices = @transform_5, window_bounds = array<i64: 4, 4>}, {transform_indices = @transform_6, window_bounds = array<i64: 4>}, {transform_indices = @transform_7, window_bounds = array<i64: 1, 4, 16, 32>}]} {
    %c0 = arith.constant 0 : index
    %c0_0 = arith.constant 0 : index
    %c0_1 = arith.constant 0 : index
    %c0_2 = arith.constant 0 : index
    %0 = vector.load %arg2[%c0, %c0_0, %c0_1, %c0_2] : memref<1x4x8x16xf32, #tpu.memory_space<vmem>>, vector<1x4x8x16xf32>
    %1 = vector.shape_cast %0 : vector<1x4x8x16xf32> to vector<4x8x16xf32>
    %c0_3 = arith.constant 0 : index
    %c0_4 = arith.constant 0 : index
    %c0_5 = arith.constant 0 : index
    %c0_6 = arith.constant 0 : index
    %2 = vector.load %arg3[%c0_3, %c0_4, %c0_5, %c0_6] : memref<1x4x16x32xf32, #tpu.memory_space<vmem>>, vector<1x4x16x32xf32>
    %3 = vector.shape_cast %2 : vector<1x4x16x32xf32> to vector<4x16x32xf32>
    %c0_7 = arith.constant 0 : index
    %c0_8 = arith.constant 0 : index
    %4 = vector.load %arg4[%c0_7, %c0_8] : memref<16x32xf32, #tpu.memory_space<vmem>>, vector<16x32xf32>
    %c0_9 = arith.constant 0 : index
    %c0_10 = arith.constant 0 : index
    %5 = vector.load %arg5[%c0_9, %c0_10] : memref<16x8xf32, #tpu.memory_space<vmem>>, vector<16x8xf32>
    %c0_11 = arith.constant 0 : index
    %c0_12 = arith.constant 0 : index
    %6 = memref.load %arg6[%c0_11, %c0_12] : memref<4x4xf32, #tpu.memory_space<smem>>
    %7 = vector.extract_strided_slice %1 {offsets = [0, 0, 0], sizes = [1, 8, 16], strides = [1, 1, 1]} : vector<4x8x16xf32> to vector<1x8x16xf32>
    %8 = vector.shape_cast %7 : vector<1x8x16xf32> to vector<8x16xf32>
    %9 = vector.broadcast %6 : f32 to vector<8x16xf32>
    %10 = arith.mulf %9, %8 : vector<8x16xf32>
    %c0_13 = arith.constant 0 : index
    %c1 = arith.constant 1 : index
    %11 = memref.load %arg6[%c0_13, %c1] : memref<4x4xf32, #tpu.memory_space<smem>>
    %12 = vector.extract_strided_slice %1 {offsets = [1, 0, 0], sizes = [1, 8, 16], strides = [1, 1, 1]} : vector<4x8x16xf32> to vector<1x8x16xf32>
    %13 = vector.shape_cast %12 : vector<1x8x16xf32> to vector<8x16xf32>
    %14 = vector.broadcast %11 : f32 to vector<8x16xf32>
    %15 = arith.mulf %14, %13 : vector<8x16xf32>
    %16 = arith.addf %10, %15 : vector<8x16xf32>
    %c0_14 = arith.constant 0 : index
    %c2 = arith.constant 2 : index
    %17 = memref.load %arg6[%c0_14, %c2] : memref<4x4xf32, #tpu.memory_space<smem>>
    %18 = vector.extract_strided_slice %1 {offsets = [2, 0, 0], sizes = [1, 8, 16], strides = [1, 1, 1]} : vector<4x8x16xf32> to vector<1x8x16xf32>
    %19 = vector.shape_cast %18 : vector<1x8x16xf32> to vector<8x16xf32>
    %20 = vector.broadcast %17 : f32 to vector<8x16xf32>
    %21 = arith.mulf %20, %19 : vector<8x16xf32>
    %22 = arith.addf %16, %21 : vector<8x16xf32>
    %c0_15 = arith.constant 0 : index
    %c3 = arith.constant 3 : index
    %23 = memref.load %arg6[%c0_15, %c3] : memref<4x4xf32, #tpu.memory_space<smem>>
    %24 = vector.extract_strided_slice %1 {offsets = [3, 0, 0], sizes = [1, 8, 16], strides = [1, 1, 1]} : vector<4x8x16xf32> to vector<1x8x16xf32>
    %25 = vector.shape_cast %24 : vector<1x8x16xf32> to vector<8x16xf32>
    %26 = vector.broadcast %23 : f32 to vector<8x16xf32>
    %27 = arith.mulf %26, %25 : vector<8x16xf32>
    %28 = arith.addf %22, %27 : vector<8x16xf32>
    %cst = arith.constant dense<0.000000e+00> : vector<8x32xf32>
    %29 = tpu.matmul %28, %4, %cst {dimension_numbers = #tpu.dot_dimension_numbers<[1], [0], [0], [1], [0, 0, 1, 1], [], []>} : vector<8x16xf32>, vector<16x32xf32>, vector<8x32xf32> -> vector<8x32xf32>
    %cst_16 = arith.constant dense<0.000000e+00> : vector<16x32xf32>
    %30 = tpu.matmul %5, %29, %cst_16 {dimension_numbers = #tpu.dot_dimension_numbers<[1], [0], [0], [1], [0, 0, 1, 1], [], []>} : vector<16x8xf32>, vector<8x32xf32>, vector<16x32xf32> -> vector<16x32xf32>
    %c0_17 = arith.constant 0 : index
    %c0_18 = arith.constant 0 : index
    %31 = memref.load %arg7[%c0_17, %c0_18] : memref<4x4xf32, #tpu.memory_space<smem>>
    %32 = vector.extract_strided_slice %3 {offsets = [0, 0, 0], sizes = [1, 16, 32], strides = [1, 1, 1]} : vector<4x16x32xf32> to vector<1x16x32xf32>
    %33 = vector.shape_cast %32 : vector<1x16x32xf32> to vector<16x32xf32>
    %34 = vector.broadcast %31 : f32 to vector<16x32xf32>
    %35 = arith.mulf %34, %33 : vector<16x32xf32>
    %c0_19 = arith.constant 0 : index
    %c1_20 = arith.constant 1 : index
    %36 = memref.load %arg7[%c0_19, %c1_20] : memref<4x4xf32, #tpu.memory_space<smem>>
    %37 = vector.extract_strided_slice %3 {offsets = [1, 0, 0], sizes = [1, 16, 32], strides = [1, 1, 1]} : vector<4x16x32xf32> to vector<1x16x32xf32>
    %38 = vector.shape_cast %37 : vector<1x16x32xf32> to vector<16x32xf32>
    %39 = vector.broadcast %36 : f32 to vector<16x32xf32>
    %40 = arith.mulf %39, %38 : vector<16x32xf32>
    %41 = arith.addf %35, %40 : vector<16x32xf32>
    %c0_21 = arith.constant 0 : index
    %c2_22 = arith.constant 2 : index
    %42 = memref.load %arg7[%c0_21, %c2_22] : memref<4x4xf32, #tpu.memory_space<smem>>
    %43 = vector.extract_strided_slice %3 {offsets = [2, 0, 0], sizes = [1, 16, 32], strides = [1, 1, 1]} : vector<4x16x32xf32> to vector<1x16x32xf32>
    %44 = vector.shape_cast %43 : vector<1x16x32xf32> to vector<16x32xf32>
    %45 = vector.broadcast %42 : f32 to vector<16x32xf32>
    %46 = arith.mulf %45, %44 : vector<16x32xf32>
    %47 = arith.addf %41, %46 : vector<16x32xf32>
    %c0_23 = arith.constant 0 : index
    %c3_24 = arith.constant 3 : index
    %48 = memref.load %arg7[%c0_23, %c3_24] : memref<4x4xf32, #tpu.memory_space<smem>>
    %49 = vector.extract_strided_slice %3 {offsets = [3, 0, 0], sizes = [1, 16, 32], strides = [1, 1, 1]} : vector<4x16x32xf32> to vector<1x16x32xf32>
    %50 = vector.shape_cast %49 : vector<1x16x32xf32> to vector<16x32xf32>
    %51 = vector.broadcast %48 : f32 to vector<16x32xf32>
    %52 = arith.mulf %51, %50 : vector<16x32xf32>
    %53 = arith.addf %47, %52 : vector<16x32xf32>
    %54 = arith.addf %30, %53 : vector<16x32xf32>
    %c0_25 = arith.constant 0 : index
    %55 = memref.load %arg8[%c0_25] : memref<4xf32, #tpu.memory_space<smem>>
    %56 = vector.broadcast %55 : f32 to vector<16x32xf32>
    %57 = arith.addf %54, %56 : vector<16x32xf32>
    %c0_26 = arith.constant 0 : index
    %c0_27 = arith.constant 0 : index
    %c0_28 = arith.constant 0 : index
    %c0_29 = arith.constant 0 : index
    %58 = vector.load %arg9[%c0_26, %c0_27, %c0_28, %c0_29] : memref<1x4x16x32xf32, #tpu.memory_space<vmem>>, vector<1x1x16x32xf32>
    %59 = vector.shape_cast %58 : vector<1x1x16x32xf32> to vector<16x32xf32>
    %60 = vector.shape_cast %57 : vector<16x32xf32> to vector<1x1x16x32xf32>
    tpu.vector_store %arg9[%c0_26, %c0_27, %c0_28, %c0_29], %60 {strides = array<i32>} : memref<1x4x16x32xf32, #tpu.memory_space<vmem>>, vector<1x1x16x32xf32>,
    %c1_30 = arith.constant 1 : index
    %c0_31 = arith.constant 0 : index
    %61 = memref.load %arg6[%c1_30, %c0_31] : memref<4x4xf32, #tpu.memory_space<smem>>
    %62 = vector.extract_strided_slice %1 {offsets = [0, 0, 0], sizes = [1, 8, 16], strides = [1, 1, 1]} : vector<4x8x16xf32> to vector<1x8x16xf32>
    %63 = vector.shape_cast %62 : vector<1x8x16xf32> to vector<8x16xf32>
    %64 = vector.broadcast %61 : f32 to vector<8x16xf32>
    %65 = arith.mulf %64, %63 : vector<8x16xf32>
    %c1_32 = arith.constant 1 : index
    %c1_33 = arith.constant 1 : index
    %66 = memref.load %arg6[%c1_32, %c1_33] : memref<4x4xf32, #tpu.memory_space<smem>>
    %67 = vector.extract_strided_slice %1 {offsets = [1, 0, 0], sizes = [1, 8, 16], strides = [1, 1, 1]} : vector<4x8x16xf32> to vector<1x8x16xf32>
    %68 = vector.shape_cast %67 : vector<1x8x16xf32> to vector<8x16xf32>
    %69 = vector.broadcast %66 : f32 to vector<8x16xf32>
    %70 = arith.mulf %69, %68 : vector<8x16xf32>
    %71 = arith.addf %65, %70 : vector<8x16xf32>
    %c1_34 = arith.constant 1 : index
    %c2_35 = arith.constant 2 : index
    %72 = memref.load %arg6[%c1_34, %c2_35] : memref<4x4xf32, #tpu.memory_space<smem>>
    %73 = vector.extract_strided_slice %1 {offsets = [2, 0, 0], sizes = [1, 8, 16], strides = [1, 1, 1]} : vector<4x8x16xf32> to vector<1x8x16xf32>
    %74 = vector.shape_cast %73 : vector<1x8x16xf32> to vector<8x16xf32>
    %75 = vector.broadcast %72 : f32 to vector<8x16xf32>
    %76 = arith.mulf %75, %74 : vector<8x16xf32>
    %77 = arith.addf %71, %76 : vector<8x16xf32>
    %c1_36 = arith.constant 1 : index
    %c3_37 = arith.constant 3 : index
    %78 = memref.load %arg6[%c1_36, %c3_37] : memref<4x4xf32, #tpu.memory_space<smem>>
    %79 = vector.extract_strided_slice %1 {offsets = [3, 0, 0], sizes = [1, 8, 16], strides = [1, 1, 1]} : vector<4x8x16xf32> to vector<1x8x16xf32>
    %80 = vector.shape_cast %79 : vector<1x8x16xf32> to vector<8x16xf32>
    %81 = vector.broadcast %78 : f32 to vector<8x16xf32>
    %82 = arith.mulf %81, %80 : vector<8x16xf32>
    %83 = arith.addf %77, %82 : vector<8x16xf32>
    %cst_38 = arith.constant dense<0.000000e+00> : vector<8x32xf32>
    %84 = tpu.matmul %83, %4, %cst_38 {dimension_numbers = #tpu.dot_dimension_numbers<[1], [0], [0], [1], [0, 0, 1, 1], [], []>} : vector<8x16xf32>, vector<16x32xf32>, vector<8x32xf32> -> vector<8x32xf32>
    %cst_39 = arith.constant dense<0.000000e+00> : vector<16x32xf32>
    %85 = tpu.matmul %5, %84, %cst_39 {dimension_numbers = #tpu.dot_dimension_numbers<[1], [0], [0], [1], [0, 0, 1, 1], [], []>} : vector<16x8xf32>, vector<8x32xf32>, vector<16x32xf32> -> vector<16x32xf32>
    %c1_40 = arith.constant 1 : index
    %c0_41 = arith.constant 0 : index
    %86 = memref.load %arg7[%c1_40, %c0_41] : memref<4x4xf32, #tpu.memory_space<smem>>
    %87 = vector.extract_strided_slice %3 {offsets = [0, 0, 0], sizes = [1, 16, 32], strides = [1, 1, 1]} : vector<4x16x32xf32> to vector<1x16x32xf32>
    %88 = vector.shape_cast %87 : vector<1x16x32xf32> to vector<16x32xf32>
    %89 = vector.broadcast %86 : f32 to vector<16x32xf32>
    %90 = arith.mulf %89, %88 : vector<16x32xf32>
    %c1_42 = arith.constant 1 : index
    %c1_43 = arith.constant 1 : index
    %91 = memref.load %arg7[%c1_42, %c1_43] : memref<4x4xf32, #tpu.memory_space<smem>>
    %92 = vector.extract_strided_slice %3 {offsets = [1, 0, 0], sizes = [1, 16, 32], strides = [1, 1, 1]} : vector<4x16x32xf32> to vector<1x16x32xf32>
    %93 = vector.shape_cast %92 : vector<1x16x32xf32> to vector<16x32xf32>
    %94 = vector.broadcast %91 : f32 to vector<16x32xf32>
    %95 = arith.mulf %94, %93 : vector<16x32xf32>
    %96 = arith.addf %90, %95 : vector<16x32xf32>
    %c1_44 = arith.constant 1 : index
    %c2_45 = arith.constant 2 : index
    %97 = memref.load %arg7[%c1_44, %c2_45] : memref<4x4xf32, #tpu.memory_space<smem>>
    %98 = vector.extract_strided_slice %3 {offsets = [2, 0, 0], sizes = [1, 16, 32], strides = [1, 1, 1]} : vector<4x16x32xf32> to vector<1x16x32xf32>
    %99 = vector.shape_cast %98 : vector<1x16x32xf32> to vector<16x32xf32>
    %100 = vector.broadcast %97 : f32 to vector<16x32xf32>
    %101 = arith.mulf %100, %99 : vector<16x32xf32>
    %102 = arith.addf %96, %101 : vector<16x32xf32>
    %c1_46 = arith.constant 1 : index
    %c3_47 = arith.constant 3 : index
    %103 = memref.load %arg7[%c1_46, %c3_47] : memref<4x4xf32, #tpu.memory_space<smem>>
    %104 = vector.extract_strided_slice %3 {offsets = [3, 0, 0], sizes = [1, 16, 32], strides = [1, 1, 1]} : vector<4x16x32xf32> to vector<1x16x32xf32>
    %105 = vector.shape_cast %104 : vector<1x16x32xf32> to vector<16x32xf32>
    %106 = vector.broadcast %103 : f32 to vector<16x32xf32>
    %107 = arith.mulf %106, %105 : vector<16x32xf32>
    %108 = arith.addf %102, %107 : vector<16x32xf32>
    %109 = arith.addf %85, %108 : vector<16x32xf32>
    %c1_48 = arith.constant 1 : index
    %110 = memref.load %arg8[%c1_48] : memref<4xf32, #tpu.memory_space<smem>>
    %111 = vector.broadcast %110 : f32 to vector<16x32xf32>
    %112 = arith.addf %109, %111 : vector<16x32xf32>
    %c0_49 = arith.constant 0 : index
    %c1_50 = arith.constant 1 : index
    %c0_51 = arith.constant 0 : index
    %c0_52 = arith.constant 0 : index
    %113 = vector.load %arg9[%c0_49, %c1_50, %c0_51, %c0_52] : memref<1x4x16x32xf32, #tpu.memory_space<vmem>>, vector<1x1x16x32xf32>
    %114 = vector.shape_cast %113 : vector<1x1x16x32xf32> to vector<16x32xf32>
    %115 = vector.shape_cast %112 : vector<16x32xf32> to vector<1x1x16x32xf32>
    tpu.vector_store %arg9[%c0_49, %c1_50, %c0_51, %c0_52], %115 {strides = array<i32>} : memref<1x4x16x32xf32, #tpu.memory_space<vmem>>, vector<1x1x16x32xf32>,
    %c2_53 = arith.constant 2 : index
    %c0_54 = arith.constant 0 : index
    %116 = memref.load %arg6[%c2_53, %c0_54] : memref<4x4xf32, #tpu.memory_space<smem>>
    %117 = vector.extract_strided_slice %1 {offsets = [0, 0, 0], sizes = [1, 8, 16], strides = [1, 1, 1]} : vector<4x8x16xf32> to vector<1x8x16xf32>
    %118 = vector.shape_cast %117 : vector<1x8x16xf32> to vector<8x16xf32>
    %119 = vector.broadcast %116 : f32 to vector<8x16xf32>
    %120 = arith.mulf %119, %118 : vector<8x16xf32>
    %c2_55 = arith.constant 2 : index
    %c1_56 = arith.constant 1 : index
    %121 = memref.load %arg6[%c2_55, %c1_56] : memref<4x4xf32, #tpu.memory_space<smem>>
    %122 = vector.extract_strided_slice %1 {offsets = [1, 0, 0], sizes = [1, 8, 16], strides = [1, 1, 1]} : vector<4x8x16xf32> to vector<1x8x16xf32>
    %123 = vector.shape_cast %122 : vector<1x8x16xf32> to vector<8x16xf32>
    %124 = vector.broadcast %121 : f32 to vector<8x16xf32>
    %125 = arith.mulf %124, %123 : vector<8x16xf32>
    %126 = arith.addf %120, %125 : vector<8x16xf32>
    %c2_57 = arith.constant 2 : index
    %c2_58 = arith.constant 2 : index
    %127 = memref.load %arg6[%c2_57, %c2_58] : memref<4x4xf32, #tpu.memory_space<smem>>
    %128 = vector.extract_strided_slice %1 {offsets = [2, 0, 0], sizes = [1, 8, 16], strides = [1, 1, 1]} : vector<4x8x16xf32> to vector<1x8x16xf32>
    %129 = vector.shape_cast %128 : vector<1x8x16xf32> to vector<8x16xf32>
    %130 = vector.broadcast %127 : f32 to vector<8x16xf32>
    %131 = arith.mulf %130, %129 : vector<8x16xf32>
    %132 = arith.addf %126, %131 : vector<8x16xf32>
    %c2_59 = arith.constant 2 : index
    %c3_60 = arith.constant 3 : index
    %133 = memref.load %arg6[%c2_59, %c3_60] : memref<4x4xf32, #tpu.memory_space<smem>>
    %134 = vector.extract_strided_slice %1 {offsets = [3, 0, 0], sizes = [1, 8, 16], strides = [1, 1, 1]} : vector<4x8x16xf32> to vector<1x8x16xf32>
    %135 = vector.shape_cast %134 : vector<1x8x16xf32> to vector<8x16xf32>
    %136 = vector.broadcast %133 : f32 to vector<8x16xf32>
    %137 = arith.mulf %136, %135 : vector<8x16xf32>
    %138 = arith.addf %132, %137 : vector<8x16xf32>
    %cst_61 = arith.constant dense<0.000000e+00> : vector<8x32xf32>
    %139 = tpu.matmul %138, %4, %cst_61 {dimension_numbers = #tpu.dot_dimension_numbers<[1], [0], [0], [1], [0, 0, 1, 1], [], []>} : vector<8x16xf32>, vector<16x32xf32>, vector<8x32xf32> -> vector<8x32xf32>
    %cst_62 = arith.constant dense<0.000000e+00> : vector<16x32xf32>
    %140 = tpu.matmul %5, %139, %cst_62 {dimension_numbers = #tpu.dot_dimension_numbers<[1], [0], [0], [1], [0, 0, 1, 1], [], []>} : vector<16x8xf32>, vector<8x32xf32>, vector<16x32xf32> -> vector<16x32xf32>
    %c2_63 = arith.constant 2 : index
    %c0_64 = arith.constant 0 : index
    %141 = memref.load %arg7[%c2_63, %c0_64] : memref<4x4xf32, #tpu.memory_space<smem>>
    %142 = vector.extract_strided_slice %3 {offsets = [0, 0, 0], sizes = [1, 16, 32], strides = [1, 1, 1]} : vector<4x16x32xf32> to vector<1x16x32xf32>
    %143 = vector.shape_cast %142 : vector<1x16x32xf32> to vector<16x32xf32>
    %144 = vector.broadcast %141 : f32 to vector<16x32xf32>
    %145 = arith.mulf %144, %143 : vector<16x32xf32>
    %c2_65 = arith.constant 2 : index
    %c1_66 = arith.constant 1 : index
    %146 = memref.load %arg7[%c2_65, %c1_66] : memref<4x4xf32, #tpu.memory_space<smem>>
    %147 = vector.extract_strided_slice %3 {offsets = [1, 0, 0], sizes = [1, 16, 32], strides = [1, 1, 1]} : vector<4x16x32xf32> to vector<1x16x32xf32>
    %148 = vector.shape_cast %147 : vector<1x16x32xf32> to vector<16x32xf32>
    %149 = vector.broadcast %146 : f32 to vector<16x32xf32>
    %150 = arith.mulf %149, %148 : vector<16x32xf32>
    %151 = arith.addf %145, %150 : vector<16x32xf32>
    %c2_67 = arith.constant 2 : index
    %c2_68 = arith.constant 2 : index
    %152 = memref.load %arg7[%c2_67, %c2_68] : memref<4x4xf32, #tpu.memory_space<smem>>
    %153 = vector.extract_strided_slice %3 {offsets = [2, 0, 0], sizes = [1, 16, 32], strides = [1, 1, 1]} : vector<4x16x32xf32> to vector<1x16x32xf32>
    %154 = vector.shape_cast %153 : vector<1x16x32xf32> to vector<16x32xf32>
    %155 = vector.broadcast %152 : f32 to vector<16x32xf32>
    %156 = arith.mulf %155, %154 : vector<16x32xf32>
    %157 = arith.addf %151, %156 : vector<16x32xf32>
    %c2_69 = arith.constant 2 : index
    %c3_70 = arith.constant 3 : index
    %158 = memref.load %arg7[%c2_69, %c3_70] : memref<4x4xf32, #tpu.memory_space<smem>>
    %159 = vector.extract_strided_slice %3 {offsets = [3, 0, 0], sizes = [1, 16, 32], strides = [1, 1, 1]} : vector<4x16x32xf32> to vector<1x16x32xf32>
    %160 = vector.shape_cast %159 : vector<1x16x32xf32> to vector<16x32xf32>
    %161 = vector.broadcast %158 : f32 to vector<16x32xf32>
    %162 = arith.mulf %161, %160 : vector<16x32xf32>
    %163 = arith.addf %157, %162 : vector<16x32xf32>
    %164 = arith.addf %140, %163 : vector<16x32xf32>
    %c2_71 = arith.constant 2 : index
    %165 = memref.load %arg8[%c2_71] : memref<4xf32, #tpu.memory_space<smem>>
    %166 = vector.broadcast %165 : f32 to vector<16x32xf32>
    %167 = arith.addf %164, %166 : vector<16x32xf32>
    %c0_72 = arith.constant 0 : index
    %c2_73 = arith.constant 2 : index
    %c0_74 = arith.constant 0 : index
    %c0_75 = arith.constant 0 : index
    %168 = vector.load %arg9[%c0_72, %c2_73, %c0_74, %c0_75] : memref<1x4x16x32xf32, #tpu.memory_space<vmem>>, vector<1x1x16x32xf32>
    %169 = vector.shape_cast %168 : vector<1x1x16x32xf32> to vector<16x32xf32>
    %170 = vector.shape_cast %167 : vector<16x32xf32> to vector<1x1x16x32xf32>
    tpu.vector_store %arg9[%c0_72, %c2_73, %c0_74, %c0_75], %170 {strides = array<i32>} : memref<1x4x16x32xf32, #tpu.memory_space<vmem>>, vector<1x1x16x32xf32>,
    %c3_76 = arith.constant 3 : index
    %c0_77 = arith.constant 0 : index
    %171 = memref.load %arg6[%c3_76, %c0_77] : memref<4x4xf32, #tpu.memory_space<smem>>
    %172 = vector.extract_strided_slice %1 {offsets = [0, 0, 0], sizes = [1, 8, 16], strides = [1, 1, 1]} : vector<4x8x16xf32> to vector<1x8x16xf32>
    %173 = vector.shape_cast %172 : vector<1x8x16xf32> to vector<8x16xf32>
    %174 = vector.broadcast %171 : f32 to vector<8x16xf32>
    %175 = arith.mulf %174, %173 : vector<8x16xf32>
    %c3_78 = arith.constant 3 : index
    %c1_79 = arith.constant 1 : index
    %176 = memref.load %arg6[%c3_78, %c1_79] : memref<4x4xf32, #tpu.memory_space<smem>>
    %177 = vector.extract_strided_slice %1 {offsets = [1, 0, 0], sizes = [1, 8, 16], strides = [1, 1, 1]} : vector<4x8x16xf32> to vector<1x8x16xf32>
    %178 = vector.shape_cast %177 : vector<1x8x16xf32> to vector<8x16xf32>
    %179 = vector.broadcast %176 : f32 to vector<8x16xf32>
    %180 = arith.mulf %179, %178 : vector<8x16xf32>
    %181 = arith.addf %175, %180 : vector<8x16xf32>
    %c3_80 = arith.constant 3 : index
    %c2_81 = arith.constant 2 : index
    %182 = memref.load %arg6[%c3_80, %c2_81] : memref<4x4xf32, #tpu.memory_space<smem>>
    %183 = vector.extract_strided_slice %1 {offsets = [2, 0, 0], sizes = [1, 8, 16], strides = [1, 1, 1]} : vector<4x8x16xf32> to vector<1x8x16xf32>
    %184 = vector.shape_cast %183 : vector<1x8x16xf32> to vector<8x16xf32>
    %185 = vector.broadcast %182 : f32 to vector<8x16xf32>
    %186 = arith.mulf %185, %184 : vector<8x16xf32>
    %187 = arith.addf %181, %186 : vector<8x16xf32>
    %c3_82 = arith.constant 3 : index
    %c3_83 = arith.constant 3 : index
    %188 = memref.load %arg6[%c3_82, %c3_83] : memref<4x4xf32, #tpu.memory_space<smem>>
    %189 = vector.extract_strided_slice %1 {offsets = [3, 0, 0], sizes = [1, 8, 16], strides = [1, 1, 1]} : vector<4x8x16xf32> to vector<1x8x16xf32>
    %190 = vector.shape_cast %189 : vector<1x8x16xf32> to vector<8x16xf32>
    %191 = vector.broadcast %188 : f32 to vector<8x16xf32>
    %192 = arith.mulf %191, %190 : vector<8x16xf32>
    %193 = arith.addf %187, %192 : vector<8x16xf32>
    %cst_84 = arith.constant dense<0.000000e+00> : vector<8x32xf32>
    %194 = tpu.matmul %193, %4, %cst_84 {dimension_numbers = #tpu.dot_dimension_numbers<[1], [0], [0], [1], [0, 0, 1, 1], [], []>} : vector<8x16xf32>, vector<16x32xf32>, vector<8x32xf32> -> vector<8x32xf32>
    %cst_85 = arith.constant dense<0.000000e+00> : vector<16x32xf32>
    %195 = tpu.matmul %5, %194, %cst_85 {dimension_numbers = #tpu.dot_dimension_numbers<[1], [0], [0], [1], [0, 0, 1, 1], [], []>} : vector<16x8xf32>, vector<8x32xf32>, vector<16x32xf32> -> vector<16x32xf32>
    %c3_86 = arith.constant 3 : index
    %c0_87 = arith.constant 0 : index
    %196 = memref.load %arg7[%c3_86, %c0_87] : memref<4x4xf32, #tpu.memory_space<smem>>
    %197 = vector.extract_strided_slice %3 {offsets = [0, 0, 0], sizes = [1, 16, 32], strides = [1, 1, 1]} : vector<4x16x32xf32> to vector<1x16x32xf32>
    %198 = vector.shape_cast %197 : vector<1x16x32xf32> to vector<16x32xf32>
    %199 = vector.broadcast %196 : f32 to vector<16x32xf32>
    %200 = arith.mulf %199, %198 : vector<16x32xf32>
    %c3_88 = arith.constant 3 : index
    %c1_89 = arith.constant 1 : index
    %201 = memref.load %arg7[%c3_88, %c1_89] : memref<4x4xf32, #tpu.memory_space<smem>>
    %202 = vector.extract_strided_slice %3 {offsets = [1, 0, 0], sizes = [1, 16, 32], strides = [1, 1, 1]} : vector<4x16x32xf32> to vector<1x16x32xf32>
    %203 = vector.shape_cast %202 : vector<1x16x32xf32> to vector<16x32xf32>
    %204 = vector.broadcast %201 : f32 to vector<16x32xf32>
    %205 = arith.mulf %204, %203 : vector<16x32xf32>
    %206 = arith.addf %200, %205 : vector<16x32xf32>
    %c3_90 = arith.constant 3 : index
    %c2_91 = arith.constant 2 : index
    %207 = memref.load %arg7[%c3_90, %c2_91] : memref<4x4xf32, #tpu.memory_space<smem>>
    %208 = vector.extract_strided_slice %3 {offsets = [2, 0, 0], sizes = [1, 16, 32], strides = [1, 1, 1]} : vector<4x16x32xf32> to vector<1x16x32xf32>
    %209 = vector.shape_cast %208 : vector<1x16x32xf32> to vector<16x32xf32>
    %210 = vector.broadcast %207 : f32 to vector<16x32xf32>
    %211 = arith.mulf %210, %209 : vector<16x32xf32>
    %212 = arith.addf %206, %211 : vector<16x32xf32>
    %c3_92 = arith.constant 3 : index
    %c3_93 = arith.constant 3 : index
    %213 = memref.load %arg7[%c3_92, %c3_93] : memref<4x4xf32, #tpu.memory_space<smem>>
    %214 = vector.extract_strided_slice %3 {offsets = [3, 0, 0], sizes = [1, 16, 32], strides = [1, 1, 1]} : vector<4x16x32xf32> to vector<1x16x32xf32>
    %215 = vector.shape_cast %214 : vector<1x16x32xf32> to vector<16x32xf32>
    %216 = vector.broadcast %213 : f32 to vector<16x32xf32>
    %217 = arith.mulf %216, %215 : vector<16x32xf32>
    %218 = arith.addf %212, %217 : vector<16x32xf32>
    %219 = arith.addf %195, %218 : vector<16x32xf32>
    %c3_94 = arith.constant 3 : index
    %220 = memref.load %arg8[%c3_94] : memref<4xf32, #tpu.memory_space<smem>>
    %221 = vector.broadcast %220 : f32 to vector<16x32xf32>
    %222 = arith.addf %219, %221 : vector<16x32xf32>
    %c0_95 = arith.constant 0 : index
    %c3_96 = arith.constant 3 : index
    %c0_97 = arith.constant 0 : index
    %c0_98 = arith.constant 0 : index
    %223 = vector.load %arg9[%c0_95, %c3_96, %c0_97, %c0_98] : memref<1x4x16x32xf32, #tpu.memory_space<vmem>>, vector<1x1x16x32xf32>
    %224 = vector.shape_cast %223 : vector<1x1x16x32xf32> to vector<16x32xf32>
    %225 = vector.shape_cast %222 : vector<16x32xf32> to vector<1x1x16x32xf32>
    tpu.vector_store %arg9[%c0_95, %c3_96, %c0_97, %c0_98], %225 {strides = array<i32>} : memref<1x4x16x32xf32, #tpu.memory_space<vmem>>, vector<1x1x16x32xf32>,
    return
  }
  func.func @transform_0(%arg0: i32, %arg1: i32) -> (i32, i32, i32, i32) {
    %c0_i32 = arith.constant 0 : i32
    %c0_i32_0 = arith.constant 0 : i32
    %c0_i32_1 = arith.constant 0 : i32
    return %arg0, %c0_i32, %arg1, %c0_i32_0 : i32, i32, i32, i32
  }
  func.func @transform_1(%arg0: i32, %arg1: i32) -> (i32, i32, i32, i32) {
    %c0_i32 = arith.constant 0 : i32
    %c0_i32_0 = arith.constant 0 : i32
    %c0_i32_1 = arith.constant 0 : i32
    return %arg0, %c0_i32, %arg1, %c0_i32_0 : i32, i32, i32, i32
  }
  func.func @transform_2(%arg0: i32, %arg1: i32) -> (i32, i32) {
    %c0_i32 = arith.constant 0 : i32
    %c0_i32_0 = arith.constant 0 : i32
    %c0_i32_1 = arith.constant 0 : i32
    return %c0_i32, %c0_i32_0 : i32, i32
  }
  func.func @transform_3(%arg0: i32, %arg1: i32) -> (i32, i32) {
    %c0_i32 = arith.constant 0 : i32
    %c0_i32_0 = arith.constant 0 : i32
    %c0_i32_1 = arith.constant 0 : i32
    return %c0_i32, %c0_i32_0 : i32, i32
  }
  func.func @transform_4(%arg0: i32, %arg1: i32) -> (i32, i32) {
    %c0_i32 = arith.constant 0 : i32
    %c0_i32_0 = arith.constant 0 : i32
    %c0_i32_1 = arith.constant 0 : i32
    return %c0_i32, %c0_i32_0 : i32, i32
  }
  func.func @transform_5(%arg0: i32, %arg1: i32) -> (i32, i32) {
    %c0_i32 = arith.constant 0 : i32
    %c0_i32_0 = arith.constant 0 : i32
    %c0_i32_1 = arith.constant 0 : i32
    return %c0_i32, %c0_i32_0 : i32, i32
  }
  func.func @transform_6(%arg0: i32, %arg1: i32) -> i32 {
    %c0_i32 = arith.constant 0 : i32
    %c0_i32_0 = arith.constant 0 : i32
    return %c0_i32 : i32
  }
  func.func @transform_7(%arg0: i32, %arg1: i32) -> (i32, i32, i32, i32) {
    %c0_i32 = arith.constant 0 : i32
    %c0_i32_0 = arith.constant 0 : i32
    %c0_i32_1 = arith.constant 0 : i32
    return %arg0, %c0_i32, %arg1, %c0_i32_0 : i32, i32, i32, i32
  }
}

</mosaic_0001>

<llo_original>
// kernel: tpu_custom_call.1
$region0: #{tpu_custom_call.1}
  #allocation0 [shape = 'u32[]', space=smem, size = 0x4, offset = 0x4, fixed_abs, tag = 'smem constant byte address 0x4 - core index']
  #allocation1 [shape = 'u32[144,128]{1,0:T(1,128)}', space=vmem, size = 0x12000, scoped, tag = 'internal scratch']
  #allocation13 [shape = 's32[]', space=sflag, size = 0x4, offset = 0, fixed_abs, tag = 'sflag constant byte address 0x0 - dummy sync flag']
  #allocation15 [shape = 's32[]', space=sflag, size = 0x4, offset = 0, fixed_abs, tag = 'sflag constant byte address 0x0 - dummy sync flag']
  %s0 = inlined_call_operand.hbm [shape: f32[2,4,16,16], index: 0, kind: input, shape index: {}]
  %s1 = inlined_call_operand.hbm [shape: f32[2,4,32,32], index: 1, kind: input, shape index: {}]
  %s2 = inlined_call_operand.vmem [shape: f32[16,32], index: 2, kind: input, shape index: {}]
  %s3 = inlined_call_operand.vmem [shape: f32[16,8], index: 3, kind: input, shape index: {}]
  %s4 = inlined_call_operand.vmem [shape: f32[4,4], index: 4, kind: input, shape index: {}]
  %s5 = inlined_call_operand.vmem [shape: f32[4,4], index: 5, kind: input, shape index: {}]
  %s6 = inlined_call_operand.vmem [shape: f32[4], index: 6, kind: input, shape index: {}]
  %s7 = inlined_call_operand.hbm [shape: f32[2,4,32,32], index: 7, kind: output, shape index: {}]
  %s8 = sld [smem:[#allocation0]]
  $region81: #{tpu_custom_call.1} parent=0
    _
  %s10 = ssub.s32 1, %s8
  %s11 = scalar_select 0, %s10, %s8
  $region1: #{tpu_custom_call.1} parent=0
    #allocation2 [shape = 'u8[32768]{0}', space=vmem, size = 0x8000, scoped, tag = 'input window, operand 0']
    #allocation3 [shape = 's32[2]{0}', space=sflag, size = 0x8, scoped, tag = 'scoped memory for tpu_custom_call.1']
    #allocation4 [shape = 's32[2]{0}', space=sflag, size = 0x8, scoped, tag = 'scoped memory for tpu_custom_call.1']
    #allocation5 [shape = 's32[2]{0}', space=sflag, size = 0x8, scoped, tag = 'scoped memory for tpu_custom_call.1']
    #allocation6 [shape = 'u8[65536]{0}', space=vmem, size = 0x10000, scoped, tag = 'input window, operand 1']
    #allocation7 [shape = 's32[2]{0}', space=sflag, size = 0x8, scoped, tag = 'scoped memory for tpu_custom_call.1']
    #allocation8 [shape = 'u8[2048]{0}', space=smem, size = 0x800, scoped, tag = 'input window, operand 4, single buffered']
    #allocation9 [shape = 'u8[2048]{0}', space=smem, size = 0x800, scoped, tag = 'input window, operand 5, single buffered']
    #allocation10 [shape = 's32[1]{0}', space=sflag, size = 0x4, scoped, tag = 'scoped memory for tpu_custom_call.1']
    #allocation11 [shape = 'u8[512]{0}', space=smem, size = 0x200, scoped, tag = 'input window, operand 6, single buffered']
    #allocation12 [shape = 'u8[65536]{0}', space=vmem, size = 0x10000, scoped, tag = 'output window, operand 0']
    %12 = vsyncpa [#allocation3], 0
    %s13 = scalar_lea.sflag [#allocation3], 1
    %14 = vsyncpa %s13, 0
    %15 = vsyncpa [#allocation7], 0
    %s16 = scalar_lea.sflag [#allocation7], 1
    %17 = vsyncpa %s16, 0
    %18 = vsyncpa [#allocation5], 0
    %19 = vsyncpa [#allocation10], 0
    %20 = vsyncpa [#allocation4], 0
    %s21 = scalar_lea.sflag [#allocation4], 1
    %22 = vsyncpa %s21, 0
    loop: start=0, step=1, limit=6
    $region2: #{tpu_custom_call.1} parent=1 // loop_pre_header
      _
    $region3: #{tpu_custom_call.1} parent=1 // loop_header
      %s24 = sphi 0, %s28
      %p25 = scmp.ge.s32.totalorder %s24, 6
      %s31 = sphi 0, %s43
      %s32 = sphi 0, %s39
      %s33 = sphi 0, %s31
      %s34 = sphi 0, %s32
      %s35 = sphi 0, %s33
      %s36 = sphi 0, %s34
      %s48 = sphi 0, %s50
      %s51 = sphi 0, %s48
      %s52 = sphi 0, %s51
      %s68 = sphi 0, %s52
      %s76 = sphi 0, %s78
      %s79 = sphi 0, %s76
      %s80 = sphi 0, %s79
      %s96 = sphi 0, %s80
      %s100 = sphi 0, %s100
      %s102 = sphi 0, %s100
      %s103 = sphi 0, %s102
      %s117 = sphi 0, %s103
      %s121 = sphi 0, %s121
      %s123 = sphi 0, %s121
      %s124 = sphi 0, %s123
      %s138 = sphi 0, %s124
      %s142 = sphi 0, %s142
      %s144 = sphi 0, %s142
      %s145 = sphi 0, %s144
      %s159 = sphi 0, %s145
      %s163 = sphi 0, %s163
      %s165 = sphi 0, %s163
      %s166 = sphi 0, %s165
      %s180 = sphi 0, %s166
      %s184 = sphi 0, %s184
      %s186 = sphi 0, %s184
      %s187 = sphi 0, %s186
      %s201 = sphi 0, %s187
      %s209 = sphi 0, %s211
      %s212 = sphi 0, %s209
      %s213 = sphi 0, %s212
      %s229 = sphi 0, %s213
    $region4: #{tpu_custom_call.1} parent=1 // loop_header_branch
      %27 = sbr.rel (%p25) target = $region8
    $region5: #{tpu_custom_call.1} parent=1 // loop_body
      %s29 = ssub.s32 %s24, 1
      %s30 = ssub.s32 %s24, 2
      %s37 = sadd.s32 1, %s32
      %p38 = scmp.ge.s32.totalorder %s37, 2
      %s39 = scalar_select %p38, 0, %s37
      %s40 = sadd.s32 1, %s31
      %s41 = scalar_select %p38, %s40, %s31
      %p42 = scmp.ge.s32.totalorder %s41, 2
      %s43 = scalar_select %p42, 0, %s41
      %s44 = ssub.s32 %s31, %s43
      %s45 = ssub.s32 %s32, %s39
      %s46 = sor.u32 %s44, %s45
      %p47 = scmp.eq.s32.totalorder %s46, 0
      %s49 = sadd.s32 %s48, 1
      %s50 = scalar_select %p47, %s48, %s49
      %p53 = pneg %p47
      %p54 = scmp.eq.s32.totalorder %s24, 3
      %p55 = por %p53, %p54
      %p56 = scmp.ne.s32.totalorder %s48, %s51
      %p57 = scmp.eq.s32.totalorder %s24, 0
      %p58 = por %p56, %p57
      %p59 = scmp.ne.s32.totalorder %s48, %s51
      %p60 = scmp.eq.s32.totalorder %s29, 3
      %p61 = por %p59, %p60
      %p62 = scmp.ne.s32.totalorder %s51, %s52
      %p63 = scmp.eq.s32.totalorder %s29, 0
      %p64 = por %p62, %p63
      %p65 = scmp.ne.s32.totalorder %s51, %s52
      %p66 = scmp.eq.s32.totalorder %s30, 3
      %p67 = por %p65, %p66
      %p69 = scmp.ne.s32.totalorder %s52, %s68
      %p70 = scmp.eq.s32.totalorder %s30, 0
      %p71 = por %p69, %p70
      %s72 = ssub.s32 %s31, %s43
      %s73 = ssub.s32 %s32, %s39
      %s74 = sor.u32 %s72, %s73
      %p75 = scmp.eq.s32.totalorder %s74, 0
      %s77 = sadd.s32 %s76, 1
      %s78 = scalar_select %p75, %s76, %s77
      %p81 = pneg %p75
      %p82 = scmp.eq.s32.totalorder %s24, 3
      %p83 = por %p81, %p82
      %p84 = scmp.ne.s32.totalorder %s76, %s79
      %p85 = scmp.eq.s32.totalorder %s24, 0
      %p86 = por %p84, %p85
      %p87 = scmp.ne.s32.totalorder %s76, %s79
      %p88 = scmp.eq.s32.totalorder %s29, 3
      %p89 = por %p87, %p88
      %p90 = scmp.ne.s32.totalorder %s79, %s80
      %p91 = scmp.eq.s32.totalorder %s29, 0
      %p92 = por %p90, %p91
      %p93 = scmp.ne.s32.totalorder %s79, %s80
      %p94 = scmp.eq.s32.totalorder %s30, 3
      %p95 = por %p93, %p94
      %p97 = scmp.ne.s32.totalorder %s80, %s96
      %p98 = scmp.eq.s32.totalorder %s30, 0
      %p99 = por %p97, %p98
      %s101 = sadd.s32 %s100, 1
      %p104 = scmp.eq.s32.totalorder %s24, 3
      %p105 = scmp.ne.s32.totalorder %s100, %s102
      %p106 = scmp.eq.s32.totalorder %s24, 0
      %p107 = por %p105, %p106
      %p108 = scmp.ne.s32.totalorder %s100, %s102
      %p109 = scmp.eq.s32.totalorder %s29, 3
      %p110 = por %p108, %p109
      %p111 = scmp.ne.s32.totalorder %s102, %s103
      %p112 = scmp.eq.s32.totalorder %s29, 0
      %p113 = por %p111, %p112
      %p114 = scmp.ne.s32.totalorder %s102, %s103
      %p115 = scmp.eq.s32.totalorder %s30, 3
      %p116 = por %p114, %p115
      %p118 = scmp.ne.s32.totalorder %s103, %s117
      %p119 = scmp.eq.s32.totalorder %s30, 0
      %p120 = por %p118, %p119
      %s122 = sadd.s32 %s121, 1
      %p125 = scmp.eq.s32.totalorder %s24, 3
      %p126 = scmp.ne.s32.totalorder %s121, %s123
      %p127 = scmp.eq.s32.totalorder %s24, 0
      %p128 = por %p126, %p127
      %p129 = scmp.ne.s32.totalorder %s121, %s123
      %p130 = scmp.eq.s32.totalorder %s29, 3
      %p131 = por %p129, %p130
      %p132 = scmp.ne.s32.totalorder %s123, %s124
      %p133 = scmp.eq.s32.totalorder %s29, 0
      %p134 = por %p132, %p133
      %p135 = scmp.ne.s32.totalorder %s123, %s124
      %p136 = scmp.eq.s32.totalorder %s30, 3
      %p137 = por %p135, %p136
      %p139 = scmp.ne.s32.totalorder %s124, %s138
      %p140 = scmp.eq.s32.totalorder %s30, 0
      %p141 = por %p139, %p140
      %s143 = sadd.s32 %s142, 1
      %p146 = scmp.eq.s32.totalorder %s24, 3
      %p147 = scmp.ne.s32.totalorder %s142, %s144
      %p148 = scmp.eq.s32.totalorder %s24, 0
      %p149 = por %p147, %p148
      %p150 = scmp.ne.s32.totalorder %s142, %s144
      %p151 = scmp.eq.s32.totalorder %s29, 3
      %p152 = por %p150, %p151
      %p153 = scmp.ne.s32.totalorder %s144, %s145
      %p154 = scmp.eq.s32.totalorder %s29, 0
      %p155 = por %p153, %p154
      %p156 = scmp.ne.s32.totalorder %s144, %s145
      %p157 = scmp.eq.s32.totalorder %s30, 3
      %p158 = por %p156, %p157
      %p160 = scmp.ne.s32.totalorder %s145, %s159
      %p161 = scmp.eq.s32.totalorder %s30, 0
      %p162 = por %p160, %p161
      %s164 = sadd.s32 %s163, 1
      %p167 = scmp.eq.s32.totalorder %s24, 3
      %p168 = scmp.ne.s32.totalorder %s163, %s165
      %p169 = scmp.eq.s32.totalorder %s24, 0
      %p170 = por %p168, %p169
      %p171 = scmp.ne.s32.totalorder %s163, %s165
      %p172 = scmp.eq.s32.totalorder %s29, 3
      %p173 = por %p171, %p172
      %p174 = scmp.ne.s32.totalorder %s165, %s166
      %p175 = scmp.eq.s32.totalorder %s29, 0
      %p176 = por %p174, %p175
      %p177 = scmp.ne.s32.totalorder %s165, %s166
      %p178 = scmp.eq.s32.totalorder %s30, 3
      %p179 = por %p177, %p178
      %p181 = scmp.ne.s32.totalorder %s166, %s180
      %p182 = scmp.eq.s32.totalorder %s30, 0
      %p183 = por %p181, %p182
      %s185 = sadd.s32 %s184, 1
      %p188 = scmp.eq.s32.totalorder %s24, 3
      %p189 = scmp.ne.s32.totalorder %s184, %s186
      %p190 = scmp.eq.s32.totalorder %s24, 0
      %p191 = por %p189, %p190
      %p192 = scmp.ne.s32.totalorder %s184, %s186
      %p193 = scmp.eq.s32.totalorder %s29, 3
      %p194 = por %p192, %p193
      %p195 = scmp.ne.s32.totalorder %s186, %s187
      %p196 = scmp.eq.s32.totalorder %s29, 0
      %p197 = por %p195, %p196
      %p198 = scmp.ne.s32.totalorder %s186, %s187
      %p199 = scmp.eq.s32.totalorder %s30, 3
      %p200 = por %p198, %p199
      %p202 = scmp.ne.s32.totalorder %s187, %s201
      %p203 = scmp.eq.s32.totalorder %s30, 0
      %p204 = por %p202, %p203
      %s205 = ssub.s32 %s31, %s43
      %s206 = ssub.s32 %s32, %s39
      %s207 = sor.u32 %s205, %s206
      %p208 = scmp.eq.s32.totalorder %s207, 0
      %s210 = sadd.s32 %s209, 1
      %s211 = scalar_select %p208, %s209, %s210
      %p214 = pneg %p208
      %p215 = scmp.eq.s32.totalorder %s24, 3
      %p216 = por %p214, %p215
      %p217 = scmp.ne.s32.totalorder %s209, %s212
      %p218 = scmp.eq.s32.totalorder %s24, 0
      %p219 = por %p217, %p218
      %p220 = scmp.ne.s32.totalorder %s209, %s212
      %p221 = scmp.eq.s32.totalorder %s29, 3
      %p222 = por %p220, %p221
      %p223 = scmp.ne.s32.totalorder %s212, %s213
      %p224 = scmp.eq.s32.totalorder %s29, 0
      %p225 = por %p223, %p224
      %p226 = scmp.ne.s32.totalorder %s212, %s213
      %p227 = scmp.eq.s32.totalorder %s30, 3
      %p228 = por %p226, %p227
      %p230 = scmp.ne.s32.totalorder %s213, %s229
      %p231 = scmp.eq.s32.totalorder %s30, 0
      %p232 = por %p230, %p231
      %p233 = scmp.le.s32.totalorder 1, %s24
      %p234 = scmp.lt.s32.totalorder %s24, 5
      %p235 = pnand %p233, %p234
      %p236 = pneg %p235
      // Predicated region
      $region9: #{tpu_custom_call.1} parent=5 // pred_check
        _
      $region10: #{tpu_custom_call.1} parent=5 // pred_check_branch
        %238 = sbr.rel (%p235) target = $region12
      $region11: #{tpu_custom_call.1} parent=5 // pred_region
        %s239 = ssub.s32 %s24, 1
        // Predicated region
        $region13: #{tpu_custom_call.1} parent=11 // pred_check
          %p240 = pneg %p113
        $region14: #{tpu_custom_call.1} parent=11 // pred_check_branch
          %242 = sbr.rel (%p240) target = $region16
        $region15: #{tpu_custom_call.1} parent=11 // pred_region
          _
        $region16: #{tpu_custom_call.1} parent=11 // pred_fallthru
          _
        // Predicated region
        $region17: #{tpu_custom_call.1} parent=11 // pred_check
          %p243 = pneg %p134
        $region18: #{tpu_custom_call.1} parent=11 // pred_check_branch
          %245 = sbr.rel (%p243) target = $region20
        $region19: #{tpu_custom_call.1} parent=11 // pred_region
          _
        $region20: #{tpu_custom_call.1} parent=11 // pred_fallthru
          _
        // Predicated region
        $region21: #{tpu_custom_call.1} parent=11 // pred_check
          %p246 = pneg %p155
        $region22: #{tpu_custom_call.1} parent=11 // pred_check_branch
          %248 = sbr.rel (%p246) target = $region24
        $region23: #{tpu_custom_call.1} parent=11 // pred_region
          %s250 = ssub.s32 64, 64
          %251 = vsyncadd [#allocation5], %s250
          %s253 = sshll.u32 %s4, 4
          %s254 = int_to_ptr.vmem [resolvable:$true] %s253
          %256 = dma.vmem_to_smem %s254, 64, [#allocation8], [#allocation5]
        $region24: #{tpu_custom_call.1} parent=11 // pred_fallthru
          _
        // Predicated region
        $region25: #{tpu_custom_call.1} parent=11 // pred_check
          %p257 = pneg %p176
        $region26: #{tpu_custom_call.1} parent=11 // pred_check_branch
          %259 = sbr.rel (%p257) target = $region28
        $region27: #{tpu_custom_call.1} parent=11 // pred_region
          %s261 = ssub.s32 64, 64
          %262 = vsyncadd [#allocation10], %s261
          %s264 = sshll.u32 %s5, 4
          %s265 = int_to_ptr.vmem [resolvable:$true] %s264
          %267 = dma.vmem_to_smem %s265, 64, [#allocation9], [#allocation10]
        $region28: #{tpu_custom_call.1} parent=11 // pred_fallthru
          _
        // Predicated region
        $region29: #{tpu_custom_call.1} parent=11 // pred_check
          %p268 = pneg %p197
        $region30: #{tpu_custom_call.1} parent=11 // pred_check_branch
          %270 = sbr.rel (%p268) target = $region32
        $region31: #{tpu_custom_call.1} parent=11 // pred_region
          %s272 = ssub.s32 16, 16
          %273 = vsyncadd [#allocation10], %s272
          %s275 = sshll.u32 %s6, 4
          %s276 = int_to_ptr.vmem [resolvable:$true] %s275
          %278 = dma.vmem_to_smem %s276, 16, [#allocation11], [#allocation10]
        $region32: #{tpu_custom_call.1} parent=11 // pred_fallthru
          _
      $region12: #{tpu_custom_call.1} parent=5 // pred_fallthru
        _
      %p279 = scmp.lt.s32.totalorder %s24, 4
      // Predicated region
      $region33: #{tpu_custom_call.1} parent=5 // pred_check
        %p280 = pneg %p279
      $region34: #{tpu_custom_call.1} parent=5 // pred_check_branch
        %282 = sbr.rel (%p280) target = $region36
      $region35: #{tpu_custom_call.1} parent=5 // pred_region
        // Predicated region
        $region37: #{tpu_custom_call.1} parent=35 // pred_check
          %p283 = pneg %p58
        $region38: #{tpu_custom_call.1} parent=35 // pred_check_branch
          %285 = sbr.rel (%p283) target = $region40
        $region39: #{tpu_custom_call.1} parent=35 // pred_region
          %s286 = sand.u32 %s48, 1
          %s287 = scalar_lea.sflag [#allocation3], %s286
          %s288 = sand.u32 %s48, 1
          %s289 = smul.addr %s288, 32
          %s290 = scalar_lea.vmem [#allocation2], %s289
          %s292 = ssub.s32 512, 512
          %293 = vsyncadd %s287, %s292
          %s294 = smul.addr %s31, 8
          %s295 = sadd.s32 %s32, %s294
          %s296 = smul.addr %s295, 128
          %s297 = scalar_lea.hbm %s0, %s296
          %s298 = sshll.u32 %s290, 4
          %s299 = int_to_ptr.vmem [resolvable:$true] %s298
          %304 = dma.hbm_to_vmem [thread:$0]  %s297, 512, %s299, %s287, 256, 128, 8
        $region40: #{tpu_custom_call.1} parent=35 // pred_fallthru
          _
        // Predicated region
        $region41: #{tpu_custom_call.1} parent=35 // pred_check
          %p305 = pneg %p86
        $region42: #{tpu_custom_call.1} parent=35 // pred_check_branch
          %307 = sbr.rel (%p305) target = $region44
        $region43: #{tpu_custom_call.1} parent=35 // pred_region
          #allocation14 [shape = 'u32[6]{0}', space=smem, size = 0x18, scoped, tag = 'DMA stride descriptor']
          %s308 = sand.u32 %s76, 1
          %s309 = scalar_lea.sflag [#allocation7], %s308
          %s310 = sand.u32 %s76, 1
          %s311 = smul.addr %s310, 64
          %s312 = scalar_lea.vmem [#allocation6], %s311
          %s313 = smul.u32 2, %s32
          %s315 = ssub.s32 1024, 1024
          %316 = vsyncadd %s309, %s315
          %s317 = smul.addr %s31, 16
          %s318 = sadd.s32 %s313, %s317
          %s319 = smul.addr %s318, 128
          %s320 = scalar_lea.hbm %s1, %s319
          %s322 = sshll.u32 1, 14
          %s323 = sxor.u32 4294967295, %s322
          %s325 = sld [smem:[#allocation0]]
          %s326 = sadd.s32 2, %s325
          %s328 = sshll.u32 7, 26
          %s329 = sxor.u32 4294967295, %s328
          %s330 = sand.u32 0, %s329
          %s331 = sshll.u32 %s326, 26
          %s332 = sor.u32 %s330, %s331
          %s333 = sshll.u32 %s312, 4
          %s334 = int_to_ptr.vmem [resolvable:$true] %s333
          %340 = sst [smem:[#allocation14]] 512
          %s341 = scalar_lea.smem [#allocation14], 1
          %342 = sst [smem:[%s341]] 256
          %s343 = scalar_lea.smem [#allocation14], 2
          %344 = sst [smem:[%s343]] 2
          %s345 = scalar_lea.smem [#allocation14], 3
          %346 = sst [smem:[%s345]] 128
          %s347 = scalar_lea.smem [#allocation14], 4
          %348 = sst [smem:[%s347]] 128
          %s349 = scalar_lea.smem [#allocation14], 5
          %350 = sst [smem:[%s349]] 8
          %352 = dma.general %s320, 1024, %s334, %s309, [#allocation13], [#allocation14], %s332, 0
        $region44: #{tpu_custom_call.1} parent=35 // pred_fallthru
          _
      $region36: #{tpu_custom_call.1} parent=5 // pred_fallthru
        _
      %p353 = scmp.le.s32.totalorder 1, %s24
      %p354 = scmp.lt.s32.totalorder %s24, 5
      %p355 = pnand %p353, %p354
      %p356 = pneg %p355
      // Predicated region
      $region45: #{tpu_custom_call.1} parent=5 // pred_check
        _
      $region46: #{tpu_custom_call.1} parent=5 // pred_check_branch
        %358 = sbr.rel (%p355) target = $region48
      $region47: #{tpu_custom_call.1} parent=5 // pred_region
        %s359 = ssub.s32 %s24, 1
        %s360 = sand.u32 %s51, 1
        %s361 = scalar_lea.sflag [#allocation3], %s360
        %s362 = sand.u32 %s51, 1
        %s363 = smul.addr %s362, 32
        %s364 = scalar_lea.vmem [#allocation2], %s363
        // Predicated region
        $region49: #{tpu_custom_call.1} parent=47 // pred_check
          %p365 = pneg %p64
        $region50: #{tpu_custom_call.1} parent=47 // pred_check_branch
          %367 = sbr.rel (%p365) target = $region52
        $region51: #{tpu_custom_call.1} parent=47 // pred_region
          %368 = dma.done %s361, 512
        $region52: #{tpu_custom_call.1} parent=47 // pred_fallthru
          _
        %s369 = sand.u32 %s79, 1
        %s370 = scalar_lea.sflag [#allocation7], %s369
        %s371 = sand.u32 %s79, 1
        %s372 = smul.addr %s371, 64
        %s373 = scalar_lea.vmem [#allocation6], %s372
        // Predicated region
        $region53: #{tpu_custom_call.1} parent=47 // pred_check
          %p374 = pneg %p92
        $region54: #{tpu_custom_call.1} parent=47 // pred_check_branch
          %376 = sbr.rel (%p374) target = $region56
        $region55: #{tpu_custom_call.1} parent=47 // pred_region
          %377 = dma.done %s370, 1024
        $region56: #{tpu_custom_call.1} parent=47 // pred_fallthru
          _
        // Predicated region
        $region57: #{tpu_custom_call.1} parent=47 // pred_check
          %p378 = pneg %p155
        $region58: #{tpu_custom_call.1} parent=47 // pred_check_branch
          %380 = sbr.rel (%p378) target = $region60
        $region59: #{tpu_custom_call.1} parent=47 // pred_region
          %381 = dma.done [#allocation5], 64
        $region60: #{tpu_custom_call.1} parent=47 // pred_fallthru
          _
        // Predicated region
        $region61: #{tpu_custom_call.1} parent=47 // pred_check
          %p382 = pneg %p176
        $region62: #{tpu_custom_call.1} parent=47 // pred_check_branch
          %384 = sbr.rel (%p382) target = $region64
        $region63: #{tpu_custom_call.1} parent=47 // pred_region
          %385 = dma.done [#allocation10], 64
        $region64: #{tpu_custom_call.1} parent=47 // pred_fallthru
          _
        // Predicated region
        $region65: #{tpu_custom_call.1} parent=47 // pred_check
          %p386 = pneg %p197
        $region66: #{tpu_custom_call.1} parent=47 // pred_check_branch
          %388 = sbr.rel (%p386) target = $region68
        $region67: #{tpu_custom_call.1} parent=47 // pred_region
          %389 = dma.done [#allocation10], 16
        $region68: #{tpu_custom_call.1} parent=47 // pred_fallthru
          _
        %390 = sfence
        %s391 = sand.u32 %s51, 1
        %s392 = scalar_lea.sflag [#allocation3], %s391
        %s393 = sand.u32 %s51, 1
        %s394 = smul.addr %s393, 32
        %s395 = scalar_lea.vmem [#allocation2], %s394
        %p396 = pneg %p64
        %p397 = pneg %p61
        %s398 = sand.u32 %s79, 1
        %s399 = scalar_lea.sflag [#allocation7], %s398
        %s400 = sand.u32 %s79, 1
        %s401 = smul.addr %s400, 64
        %s402 = scalar_lea.vmem [#allocation6], %s401
        %p403 = pneg %p92
        %p404 = pneg %p89
        %p405 = pneg %p113
        %p406 = pneg %p110
        %p407 = pneg %p134
        %p408 = pneg %p131
        %p409 = pneg %p155
        %p410 = pneg %p152
        %p411 = pneg %p176
        %p412 = pneg %p173
        %p413 = pneg %p197
        %p414 = pneg %p194
        %p415 = pneg %p225
        %p416 = pneg %p222
        %s417 = sand.u32 %s212, 1
        %s418 = scalar_lea.sflag [#allocation4], %s417
        %s419 = sand.u32 %s212, 1
        %s420 = smul.addr %s419, 64
        %s421 = scalar_lea.vmem [#allocation12], %s420
        %s422 = smul.u32 2, %s34
        %s423 = smul.u32 2, %s34
        %v424 = vld [vmem:[%s364] sm:$0xff]
        %v425 = vld [vmem:[%s364 + $0x8] sm:$0xff]
        %v426 = vld [vmem:[%s364 + $0x10] sm:$0xff]
        %v427 = vld [vmem:[%s364 + $0x18] sm:$0xff]
        %v428 = vld [vmem:[%s373] sm:$0xff]
        %v429 = vld [vmem:[%s373 + $0x8] sm:$0xff]
        %v430 = vld [vmem:[%s373 + $0x10] sm:$0xff]
        %v431 = vld [vmem:[%s373 + $0x18] sm:$0xff]
        %v432 = vld [vmem:[%s373 + $0x20] sm:$0xff]
        %v433 = vld [vmem:[%s373 + $0x28] sm:$0xff]
        %v434 = vld [vmem:[%s373 + $0x30] sm:$0xff]
        %v435 = vld [vmem:[%s373 + $0x38] sm:$0xff]
        %v436 = vld [vmem:[%s2] sm:$0xff]
        %v437 = vld [vmem:[%s2 + $0x8] sm:$0xff]
        %v438 = vld [vmem:[%s3] sm:$0xff]
        %v439 = vld [vmem:[%s3 + $0x8] sm:$0xff]
        %s440 = sld [smem:[#allocation8]]
        %v441 = vstv %s440
        %v442 = vmul.f32 %v441, %v424
        %s443 = sld [smem:[#allocation8 + $0x1]]
        %v444 = vstv %s443
        %v445 = vmul.f32 %v444, %v425
        %v446 = vadd.f32 %v442, %v445
        %s447 = sld [smem:[#allocation8 + $0x2]]
        %v448 = vstv %s447
        %v449 = vmul.f32 %v448, %v426
        %v450 = vadd.f32 %v446, %v449
        %s451 = sld [smem:[#allocation8 + $0x3]]
        %v452 = vstv %s451
        %v453 = vmul.f32 %v452, %v427
        %v454 = vadd.f32 %v450, %v453
        %vm455 = vcmask 130048
        %v457 = vsel %vm455, %v454, 0
        %459 = vmatprep.subr.mxu0 0.0
        %460 = vmatpush1.msra.mxu0 %v436
        %461 = vmatprep.subr.mxu0 0.0
        %462 = vmatpush1.msra.mxu0 %v437
        %463 = vmatprep.subr.mxu0 0.0
        %464 = vmatpush1.msra.mxu0 0.0
        %465 = vmatprep.subr.mxu0 0.0
        %466 = vmatpush1.msra.mxu0 0.0
        %467 = vmatprep.subr.mxu0 0.0
        %468 = vmatpush1.msra.mxu0 0.0
        %469 = vmatprep.subr.mxu0 0.0
        %470 = vmatpush1.msra.mxu0 0.0
        %471 = vmatprep.subr.mxu0 0.0
        %472 = vmatpush1.msra.mxu0 0.0
        %473 = vmatprep.subr.mxu0 0.0
        %474 = vmatpush1.msra.mxu0 0.0
        %475 = vmatprep.subr.mxu0 0.0
        %476 = vmatpush1.msra.mxu0 0.0
        %477 = vmatprep.subr.mxu0 0.0
        %478 = vmatpush1.msra.mxu0 0.0
        %479 = vmatprep.subr.mxu0 0.0
        %480 = vmatpush1.msra.mxu0 0.0
        %481 = vmatprep.subr.mxu0 0.0
        %482 = vmatpush1.msra.mxu0 0.0
        %483 = vmatprep.subr.mxu0 0.0
        %484 = vmatpush1.msra.mxu0 0.0
        %485 = vmatprep.subr.mxu0 0.0
        %486 = vmatpush1.msra.mxu0 0.0
        %487 = vmatprep.subr.mxu0 0.0
        %488 = vmatpush1.msra.mxu0 0.0
        %489 = vmatprep.subr.mxu0 0.0
        %490 = vmatpush1.msra.mxu0 0.0
        %491 = vmatprep.subr.mxu0 0.0
        %492 = vmatpush1.msra.mxu0 0.0
        %493 = vmatprep.subr.mxu0 0.0
        %494 = vmatpush1.msra.mxu0 0.0
        %495 = vmatprep.subr.mxu0 0.0
        %496 = vmatpush1.msra.mxu0 0.0
        %497 = vmatprep.subr.mxu0 0.0
        %498 = vmatpush1.msra.mxu0 0.0
        %499 = vmatprep.subr.mxu0 0.0
        %500 = vmatpush1.msra.mxu0 0.0
        %501 = vmatprep.subr.mxu0 0.0
        %502 = vmatpush1.msra.mxu0 0.0
        %503 = vmatprep.subr.mxu0 0.0
        %504 = vmatpush1.msra.mxu0 0.0
        %505 = vmatprep.subr.mxu0 0.0
        %506 = vmatpush1.msra.mxu0 0.0
        %507 = vmatprep.subr.mxu0 0.0
        %508 = vmatpush1.msra.mxu0 0.0
        %509 = vmatprep.subr.mxu0 0.0
        %510 = vmatpush1.msra.mxu0 0.0
        %511 = vmatprep.subr.mxu0 0.0
        %512 = vmatpush1.msra.mxu0 0.0
        %513 = vmatprep.subr.mxu0 0.0
        %514 = vmatpush1.msra.mxu0 0.0
        %515 = vmatprep.subr.mxu0 0.0
        %516 = vmatpush1.msra.mxu0 0.0
        %517 = vmatprep.subr.mxu0 0.0
        %518 = vmatpush1.msra.mxu0 0.0
        %519 = vmatprep.subr.mxu0 0.0
        %520 = vmatpush1.msra.mxu0 0.0
        %521 = vmatprep.subr.mxu0 0.0
        %522 = vmatpush1.msra.mxu0 0.0
        %523 = vmatprep.mubr.f32.mxu0 0.0
        %524 = vmatmul.mubr.f32.gmra.mrb[0].mxu0 %v457
        %v525 = vpop.f32.mrb[0].mxu0
        %v526 = vadd.f32 0.0, %v525
        %v527 = vpop.f32.mrb[0].mxu0
        %528 = vdwg.mxu0
        %s529 = sld [smem:[#allocation9]]
        %v530 = vstv %s529
        %v531 = vmul.f32 %v530, %v428
        %v532 = vmul.f32 %v530, %v429
        %s533 = sld [smem:[#allocation9 + $0x1]]
        %v534 = vstv %s533
        %v535 = vmul.f32 %v534, %v430
        %v536 = vmul.f32 %v534, %v431
        %v537 = vadd.f32 %v531, %v535
        %v538 = vadd.f32 %v532, %v536
        %s539 = sld [smem:[#allocation9 + $0x2]]
        %v540 = vstv %s539
        %v541 = vmul.f32 %v540, %v432
        %v542 = vmul.f32 %v540, %v433
        %v543 = vadd.f32 %v537, %v541
        %v544 = vadd.f32 %v538, %v542
        %s545 = sld [smem:[#allocation9 + $0x3]]
        %v546 = vstv %s545
        %v547 = vmul.f32 %v546, %v434
        %v548 = vmul.f32 %v546, %v435
        %v549 = vadd.f32 %v543, %v547
        %v550 = vadd.f32 %v544, %v548
        %vm551 = vcmask 64512
        %v553 = vsel %vm551, %v438, 0
        %v556 = vsel %vm551, %v439, 0
        %558 = vmatprep.subr.mxu0 0.0
        %559 = vmatpush1.msra.mxu0 %v526
        %560 = vmatprep.subr.mxu0 0.0
        %561 = vmatpush1.msra.mxu0 0.0
        %562 = vmatprep.subr.mxu0 0.0
        %563 = vmatpush1.msra.mxu0 0.0
        %564 = vmatprep.subr.mxu0 0.0
        %565 = vmatpush1.msra.mxu0 0.0
        %566 = vmatprep.subr.mxu0 0.0
        %567 = vmatpush1.msra.mxu0 0.0
        %568 = vmatprep.subr.mxu0 0.0
        %569 = vmatpush1.msra.mxu0 0.0
        %570 = vmatprep.subr.mxu0 0.0
        %571 = vmatpush1.msra.mxu0 0.0
        %572 = vmatprep.subr.mxu0 0.0
        %573 = vmatpush1.msra.mxu0 0.0
        %574 = vmatprep.subr.mxu0 0.0
        %575 = vmatpush1.msra.mxu0 0.0
        %576 = vmatprep.subr.mxu0 0.0
        %577 = vmatpush1.msra.mxu0 0.0
        %578 = vmatprep.subr.mxu0 0.0
        %579 = vmatpush1.msra.mxu0 0.0
        %580 = vmatprep.subr.mxu0 0.0
        %581 = vmatpush1.msra.mxu0 0.0
        %582 = vmatprep.subr.mxu0 0.0
        %583 = vmatpush1.msra.mxu0 0.0
        %584 = vmatprep.subr.mxu0 0.0
        %585 = vmatpush1.msra.mxu0 0.0
        %586 = vmatprep.subr.mxu0 0.0
        %587 = vmatpush1.msra.mxu0 0.0
        %588 = vmatprep.subr.mxu0 0.0
        %589 = vmatpush1.msra.mxu0 0.0
        %590 = vmatprep.subr.mxu0 0.0
        %591 = vmatpush1.msra.mxu0 0.0
        %592 = vmatprep.subr.mxu0 0.0
        %593 = vmatpush1.msra.mxu0 0.0
        %594 = vmatprep.subr.mxu0 0.0
        %595 = vmatpush1.msra.mxu0 0.0
        %596 = vmatprep.subr.mxu0 0.0
        %597 = vmatpush1.msra.mxu0 0.0
        %598 = vmatprep.subr.mxu0 0.0
        %599 = vmatpush1.msra.mxu0 0.0
        %600 = vmatprep.subr.mxu0 0.0
        %601 = vmatpush1.msra.mxu0 0.0
        %602 = vmatprep.subr.mxu0 0.0
        %603 = vmatpush1.msra.mxu0 0.0
        %604 = vmatprep.subr.mxu0 0.0
        %605 = vmatpush1.msra.mxu0 0.0
        %606 = vmatprep.subr.mxu0 0.0
        %607 = vmatpush1.msra.mxu0 0.0
        %608 = vmatprep.subr.mxu0 0.0
        %609 = vmatpush1.msra.mxu0 0.0
        %610 = vmatprep.subr.mxu0 0.0
        %611 = vmatpush1.msra.mxu0 0.0
        %612 = vmatprep.subr.mxu0 0.0
        %613 = vmatpush1.msra.mxu0 0.0
        %614 = vmatprep.subr.mxu0 0.0
        %615 = vmatpush1.msra.mxu0 0.0
        %616 = vmatprep.subr.mxu0 0.0
        %617 = vmatpush1.msra.mxu0 0.0
        %618 = vmatprep.subr.mxu0 0.0
        %619 = vmatpush1.msra.mxu0 0.0
        %620 = vmatprep.subr.mxu0 0.0
        %621 = vmatpush1.msra.mxu0 0.0
        %622 = vmatprep.mubr.f32.mxu0 0.0
        %623 = vmatmul.mubr.f32.gmra.mrb[0].mxu0 %v553
        %v624 = vpop.f32.mrb[0].mxu0
        %v625 = vadd.f32 %v549, %v624
        %v626 = vpop.f32.mrb[0].mxu0
        %627 = vmatprep.mubr.f32.mxu0 0.0
        %628 = vmatmul.mubr.f32.gmra.mrb[0].mxu0 %v556
        %v629 = vpop.f32.mrb[0].mxu0
        %v630 = vadd.f32 %v550, %v629
        %v631 = vpop.f32.mrb[0].mxu0
        %632 = vdwg.mxu0
        %s633 = sld [smem:[#allocation11]]
        %v634 = vstv %s633
        %v635 = vadd.f32 %v625, %v634
        %v636 = vadd.f32 %v630, %v634
        %vm637 = vcmask 261120
        %638 = vst.msk [vmem:[%s421] sm:$0xff] %vm637, %v635
        %639 = vst.msk [vmem:[%s421 + $0x8] sm:$0xff] %vm637, %v636
        %s640 = sld [smem:[#allocation8 + $0x80]]
        %v641 = vstv %s640
        %v642 = vmul.f32 %v641, %v424
        %s643 = sld [smem:[#allocation8 + $0x81]]
        %v644 = vstv %s643
        %v645 = vmul.f32 %v644, %v425
        %v646 = vadd.f32 %v642, %v645
        %s647 = sld [smem:[#allocation8 + $0x82]]
        %v648 = vstv %s647
        %v649 = vmul.f32 %v648, %v426
        %v650 = vadd.f32 %v646, %v649
        %s651 = sld [smem:[#allocation8 + $0x83]]
        %v652 = vstv %s651
        %v653 = vmul.f32 %v652, %v427
        %v654 = vadd.f32 %v650, %v653
        %v656 = vsel %vm455, %v654, 0
        %658 = vmatprep.subr.mxu0 0.0
        %659 = vmatpush1.msra.mxu0 %v436
        %660 = vmatprep.subr.mxu0 0.0
        %661 = vmatpush1.msra.mxu0 %v437
        %662 = vmatprep.subr.mxu0 0.0
        %663 = vmatpush1.msra.mxu0 0.0
        %664 = vmatprep.subr.mxu0 0.0
        %665 = vmatpush1.msra.mxu0 0.0
        %666 = vmatprep.subr.mxu0 0.0
        %667 = vmatpush1.msra.mxu0 0.0
        %668 = vmatprep.subr.mxu0 0.0
        %669 = vmatpush1.msra.mxu0 0.0
        %670 = vmatprep.subr.mxu0 0.0
        %671 = vmatpush1.msra.mxu0 0.0
        %672 = vmatprep.subr.mxu0 0.0
        %673 = vmatpush1.msra.mxu0 0.0
        %674 = vmatprep.subr.mxu0 0.0
        %675 = vmatpush1.msra.mxu0 0.0
        %676 = vmatprep.subr.mxu0 0.0
        %677 = vmatpush1.msra.mxu0 0.0
        %678 = vmatprep.subr.mxu0 0.0
        %679 = vmatpush1.msra.mxu0 0.0
        %680 = vmatprep.subr.mxu0 0.0
        %681 = vmatpush1.msra.mxu0 0.0
        %682 = vmatprep.subr.mxu0 0.0
        %683 = vmatpush1.msra.mxu0 0.0
        %684 = vmatprep.subr.mxu0 0.0
        %685 = vmatpush1.msra.mxu0 0.0
        %686 = vmatprep.subr.mxu0 0.0
        %687 = vmatpush1.msra.mxu0 0.0
        %688 = vmatprep.subr.mxu0 0.0
        %689 = vmatpush1.msra.mxu0 0.0
        %690 = vmatprep.subr.mxu0 0.0
        %691 = vmatpush1.msra.mxu0 0.0
        %692 = vmatprep.subr.mxu0 0.0
        %693 = vmatpush1.msra.mxu0 0.0
        %694 = vmatprep.subr.mxu0 0.0
        %695 = vmatpush1.msra.mxu0 0.0
        %696 = vmatprep.subr.mxu0 0.0
        %697 = vmatpush1.msra.mxu0 0.0
        %698 = vmatprep.subr.mxu0 0.0
        %699 = vmatpush1.msra.mxu0 0.0
        %700 = vmatprep.subr.mxu0 0.0
        %701 = vmatpush1.msra.mxu0 0.0
        %702 = vmatprep.subr.mxu0 0.0
        %703 = vmatpush1.msra.mxu0 0.0
        %704 = vmatprep.subr.mxu0 0.0
        %705 = vmatpush1.msra.mxu0 0.0
        %706 = vmatprep.subr.mxu0 0.0
        %707 = vmatpush1.msra.mxu0 0.0
        %708 = vmatprep.subr.mxu0 0.0
        %709 = vmatpush1.msra.mxu0 0.0
        %710 = vmatprep.subr.mxu0 0.0
        %711 = vmatpush1.msra.mxu0 0.0
        %712 = vmatprep.subr.mxu0 0.0
        %713 = vmatpush1.msra.mxu0 0.0
        %714 = vmatprep.subr.mxu0 0.0
        %715 = vmatpush1.msra.mxu0 0.0
        %716 = vmatprep.subr.mxu0 0.0
        %717 = vmatpush1.msra.mxu0 0.0
        %718 = vmatprep.subr.mxu0 0.0
        %719 = vmatpush1.msra.mxu0 0.0
        %720 = vmatprep.subr.mxu0 0.0
        %721 = vmatpush1.msra.mxu0 0.0
        %722 = vmatprep.mubr.f32.mxu0 0.0
        %723 = vmatmul.mubr.f32.gmra.mrb[0].mxu0 %v656
        %v724 = vpop.f32.mrb[0].mxu0
        %v725 = vadd.f32 0.0, %v724
        %v726 = vpop.f32.mrb[0].mxu0
        %727 = vdwg.mxu0
        %s728 = sld [smem:[#allocation9 + $0x80]]
        %v729 = vstv %s728
        %v730 = vmul.f32 %v729, %v428
        %v731 = vmul.f32 %v729, %v429
        %s732 = sld [smem:[#allocation9 + $0x81]]
        %v733 = vstv %s732
        %v734 = vmul.f32 %v733, %v430
        %v735 = vmul.f32 %v733, %v431
        %v736 = vadd.f32 %v730, %v734
        %v737 = vadd.f32 %v731, %v735
        %s738 = sld [smem:[#allocation9 + $0x82]]
        %v739 = vstv %s738
        %v740 = vmul.f32 %v739, %v432
        %v741 = vmul.f32 %v739, %v433
        %v742 = vadd.f32 %v736, %v740
        %v743 = vadd.f32 %v737, %v741
        %s744 = sld [smem:[#allocation9 + $0x83]]
        %v745 = vstv %s744
        %v746 = vmul.f32 %v745, %v434
        %v747 = vmul.f32 %v745, %v435
        %v748 = vadd.f32 %v742, %v746
        %v749 = vadd.f32 %v743, %v747
        %750 = vmatprep.subr.mxu0 0.0
        %751 = vmatpush1.msra.mxu0 %v725
        %752 = vmatprep.subr.mxu0 0.0
        %753 = vmatpush1.msra.mxu0 0.0
        %754 = vmatprep.subr.mxu0 0.0
        %755 = vmatpush1.msra.mxu0 0.0
        %756 = vmatprep.subr.mxu0 0.0
        %757 = vmatpush1.msra.mxu0 0.0
        %758 = vmatprep.subr.mxu0 0.0
        %759 = vmatpush1.msra.mxu0 0.0
        %760 = vmatprep.subr.mxu0 0.0
        %761 = vmatpush1.msra.mxu0 0.0
        %762 = vmatprep.subr.mxu0 0.0
        %763 = vmatpush1.msra.mxu0 0.0
        %764 = vmatprep.subr.mxu0 0.0
        %765 = vmatpush1.msra.mxu0 0.0
        %766 = vmatprep.subr.mxu0 0.0
        %767 = vmatpush1.msra.mxu0 0.0
        %768 = vmatprep.subr.mxu0 0.0
        %769 = vmatpush1.msra.mxu0 0.0
        %770 = vmatprep.subr.mxu0 0.0
        %771 = vmatpush1.msra.mxu0 0.0
        %772 = vmatprep.subr.mxu0 0.0
        %773 = vmatpush1.msra.mxu0 0.0
        %774 = vmatprep.subr.mxu0 0.0
        %775 = vmatpush1.msra.mxu0 0.0
        %776 = vmatprep.subr.mxu0 0.0
        %777 = vmatpush1.msra.mxu0 0.0
        %778 = vmatprep.subr.mxu0 0.0
        %779 = vmatpush1.msra.mxu0 0.0
        %780 = vmatprep.subr.mxu0 0.0
        %781 = vmatpush1.msra.mxu0 0.0
        %782 = vmatprep.subr.mxu0 0.0
        %783 = vmatpush1.msra.mxu0 0.0
        %784 = vmatprep.subr.mxu0 0.0
        %785 = vmatpush1.msra.mxu0 0.0
        %786 = vmatprep.subr.mxu0 0.0
        %787 = vmatpush1.msra.mxu0 0.0
        %788 = vmatprep.subr.mxu0 0.0
        %789 = vmatpush1.msra.mxu0 0.0
        %790 = vmatprep.subr.mxu0 0.0
        %791 = vmatpush1.msra.mxu0 0.0
        %792 = vmatprep.subr.mxu0 0.0
        %793 = vmatpush1.msra.mxu0 0.0
        %794 = vmatprep.subr.mxu0 0.0
        %795 = vmatpush1.msra.mxu0 0.0
        %796 = vmatprep.subr.mxu0 0.0
        %797 = vmatpush1.msra.mxu0 0.0
        %798 = vmatprep.subr.mxu0 0.0
        %799 = vmatpush1.msra.mxu0 0.0
        %800 = vmatprep.subr.mxu0 0.0
        %801 = vmatpush1.msra.mxu0 0.0
        %802 = vmatprep.subr.mxu0 0.0
        %803 = vmatpush1.msra.mxu0 0.0
        %804 = vmatprep.subr.mxu0 0.0
        %805 = vmatpush1.msra.mxu0 0.0
        %806 = vmatprep.subr.mxu0 0.0
        %807 = vmatpush1.msra.mxu0 0.0
        %808 = vmatprep.subr.mxu0 0.0
        %809 = vmatpush1.msra.mxu0 0.0
        %810 = vmatprep.subr.mxu0 0.0
        %811 = vmatpush1.msra.mxu0 0.0
        %812 = vmatprep.subr.mxu0 0.0
        %813 = vmatpush1.msra.mxu0 0.0
        %814 = vmatprep.mubr.f32.mxu0 0.0
        %815 = vmatmul.mubr.f32.gmra.mrb[0].mxu0 %v553
        %v816 = vpop.f32.mrb[0].mxu0
        %v817 = vadd.f32 %v748, %v816
        %v818 = vpop.f32.mrb[0].mxu0
        %819 = vmatprep.mubr.f32.mxu0 0.0
        %820 = vmatmul.mubr.f32.gmra.mrb[0].mxu0 %v556
        %v821 = vpop.f32.mrb[0].mxu0
        %v822 = vadd.f32 %v749, %v821
        %v823 = vpop.f32.mrb[0].mxu0
        %824 = vdwg.mxu0
        %s825 = sld [smem:[#allocation11 + $0x1]]
        %v826 = vstv %s825
        %v827 = vadd.f32 %v817, %v826
        %v828 = vadd.f32 %v822, %v826
        %s829 = scalar_lea.vmem %s421, 16 [#allocation12]
        %830 = vst.msk [vmem:[%s829] sm:$0xff] %vm637, %v827
        %831 = vst.msk [vmem:[%s829 + $0x8] sm:$0xff] %vm637, %v828
        %s832 = sld [smem:[#allocation8 + $0x100]]
        %v833 = vstv %s832
        %v834 = vmul.f32 %v833, %v424
        %s835 = sld [smem:[#allocation8 + $0x101]]
        %v836 = vstv %s835
        %v837 = vmul.f32 %v836, %v425
        %v838 = vadd.f32 %v834, %v837
        %s839 = sld [smem:[#allocation8 + $0x102]]
        %v840 = vstv %s839
        %v841 = vmul.f32 %v840, %v426
        %v842 = vadd.f32 %v838, %v841
        %s843 = sld [smem:[#allocation8 + $0x103]]
        %v844 = vstv %s843
        %v845 = vmul.f32 %v844, %v427
        %v846 = vadd.f32 %v842, %v845
        %v848 = vsel %vm455, %v846, 0
        %850 = vmatprep.subr.mxu0 0.0
        %851 = vmatpush1.msra.mxu0 %v436
        %852 = vmatprep.subr.mxu0 0.0
        %853 = vmatpush1.msra.mxu0 %v437
        %854 = vmatprep.subr.mxu0 0.0
        %855 = vmatpush1.msra.mxu0 0.0
        %856 = vmatprep.subr.mxu0 0.0
        %857 = vmatpush1.msra.mxu0 0.0
        %858 = vmatprep.subr.mxu0 0.0
        %859 = vmatpush1.msra.mxu0 0.0
        %860 = vmatprep.subr.mxu0 0.0
        %861 = vmatpush1.msra.mxu0 0.0
        %862 = vmatprep.subr.mxu0 0.0
        %863 = vmatpush1.msra.mxu0 0.0
        %864 = vmatprep.subr.mxu0 0.0
        %865 = vmatpush1.msra.mxu0 0.0
        %866 = vmatprep.subr.mxu0 0.0
        %867 = vmatpush1.msra.mxu0 0.0
        %868 = vmatprep.subr.mxu0 0.0
        %869 = vmatpush1.msra.mxu0 0.0
        %870 = vmatprep.subr.mxu0 0.0
        %871 = vmatpush1.msra.mxu0 0.0
        %872 = vmatprep.subr.mxu0 0.0
        %873 = vmatpush1.msra.mxu0 0.0
        %874 = vmatprep.subr.mxu0 0.0
        %875 = vmatpush1.msra.mxu0 0.0
        %876 = vmatprep.subr.mxu0 0.0
        %877 = vmatpush1.msra.mxu0 0.0
        %878 = vmatprep.subr.mxu0 0.0
        %879 = vmatpush1.msra.mxu0 0.0
        %880 = vmatprep.subr.mxu0 0.0
        %881 = vmatpush1.msra.mxu0 0.0
        %882 = vmatprep.subr.mxu0 0.0
        %883 = vmatpush1.msra.mxu0 0.0
        %884 = vmatprep.subr.mxu0 0.0
        %885 = vmatpush1.msra.mxu0 0.0
        %886 = vmatprep.subr.mxu0 0.0
        %887 = vmatpush1.msra.mxu0 0.0
        %888 = vmatprep.subr.mxu0 0.0
        %889 = vmatpush1.msra.mxu0 0.0
        %890 = vmatprep.subr.mxu0 0.0
        %891 = vmatpush1.msra.mxu0 0.0
        %892 = vmatprep.subr.mxu0 0.0
        %893 = vmatpush1.msra.mxu0 0.0
        %894 = vmatprep.subr.mxu0 0.0
        %895 = vmatpush1.msra.mxu0 0.0
        %896 = vmatprep.subr.mxu0 0.0
        %897 = vmatpush1.msra.mxu0 0.0
        %898 = vmatprep.subr.mxu0 0.0
        %899 = vmatpush1.msra.mxu0 0.0
        %900 = vmatprep.subr.mxu0 0.0
        %901 = vmatpush1.msra.mxu0 0.0
        %902 = vmatprep.subr.mxu0 0.0
        %903 = vmatpush1.msra.mxu0 0.0
        %904 = vmatprep.subr.mxu0 0.0
        %905 = vmatpush1.msra.mxu0 0.0
        %906 = vmatprep.subr.mxu0 0.0
        %907 = vmatpush1.msra.mxu0 0.0
        %908 = vmatprep.subr.mxu0 0.0
        %909 = vmatpush1.msra.mxu0 0.0
        %910 = vmatprep.subr.mxu0 0.0
        %911 = vmatpush1.msra.mxu0 0.0
        %912 = vmatprep.subr.mxu0 0.0
        %913 = vmatpush1.msra.mxu0 0.0
        %914 = vmatprep.mubr.f32.mxu0 0.0
        %915 = vmatmul.mubr.f32.gmra.mrb[0].mxu0 %v848
        %v916 = vpop.f32.mrb[0].mxu0
        %v917 = vadd.f32 0.0, %v916
        %v918 = vpop.f32.mrb[0].mxu0
        %919 = vdwg.mxu0
        %s920 = sld [smem:[#allocation9 + $0x100]]
        %v921 = vstv %s920
        %v922 = vmul.f32 %v921, %v428
        %v923 = vmul.f32 %v921, %v429
        %s924 = sld [smem:[#allocation9 + $0x101]]
        %v925 = vstv %s924
        %v926 = vmul.f32 %v925, %v430
        %v927 = vmul.f32 %v925, %v431
        %v928 = vadd.f32 %v922, %v926
        %v929 = vadd.f32 %v923, %v927
        %s930 = sld [smem:[#allocation9 + $0x102]]
        %v931 = vstv %s930
        %v932 = vmul.f32 %v931, %v432
        %v933 = vmul.f32 %v931, %v433
        %v934 = vadd.f32 %v928, %v932
        %v935 = vadd.f32 %v929, %v933
        %s936 = sld [smem:[#allocation9 + $0x103]]
        %v937 = vstv %s936
        %v938 = vmul.f32 %v937, %v434
        %v939 = vmul.f32 %v937, %v435
        %v940 = vadd.f32 %v934, %v938
        %v941 = vadd.f32 %v935, %v939
        %942 = vmatprep.subr.mxu0 0.0
        %943 = vmatpush1.msra.mxu0 %v917
        %944 = vmatprep.subr.mxu0 0.0
        %945 = vmatpush1.msra.mxu0 0.0
        %946 = vmatprep.subr.mxu0 0.0
        %947 = vmatpush1.msra.mxu0 0.0
        %948 = vmatprep.subr.mxu0 0.0
        %949 = vmatpush1.msra.mxu0 0.0
        %950 = vmatprep.subr.mxu0 0.0
        %951 = vmatpush1.msra.mxu0 0.0
        %952 = vmatprep.subr.mxu0 0.0
        %953 = vmatpush1.msra.mxu0 0.0
        %954 = vmatprep.subr.mxu0 0.0
        %955 = vmatpush1.msra.mxu0 0.0
        %956 = vmatprep.subr.mxu0 0.0
        %957 = vmatpush1.msra.mxu0 0.0
        %958 = vmatprep.subr.mxu0 0.0
        %959 = vmatpush1.msra.mxu0 0.0
        %960 = vmatprep.subr.mxu0 0.0
        %961 = vmatpush1.msra.mxu0 0.0
        %962 = vmatprep.subr.mxu0 0.0
        %963 = vmatpush1.msra.mxu0 0.0
        %964 = vmatprep.subr.mxu0 0.0
        %965 = vmatpush1.msra.mxu0 0.0
        %966 = vmatprep.subr.mxu0 0.0
        %967 = vmatpush1.msra.mxu0 0.0
        %968 = vmatprep.subr.mxu0 0.0
        %969 = vmatpush1.msra.mxu0 0.0
        %970 = vmatprep.subr.mxu0 0.0
        %971 = vmatpush1.msra.mxu0 0.0
        %972 = vmatprep.subr.mxu0 0.0
        %973 = vmatpush1.msra.mxu0 0.0
        %974 = vmatprep.subr.mxu0 0.0
        %975 = vmatpush1.msra.mxu0 0.0
        %976 = vmatprep.subr.mxu0 0.0
        %977 = vmatpush1.msra.mxu0 0.0
        %978 = vmatprep.subr.mxu0 0.0
        %979 = vmatpush1.msra.mxu0 0.0
        %980 = vmatprep.subr.mxu0 0.0
        %981 = vmatpush1.msra.mxu0 0.0
        %982 = vmatprep.subr.mxu0 0.0
        %983 = vmatpush1.msra.mxu0 0.0
        %984 = vmatprep.subr.mxu0 0.0
        %985 = vmatpush1.msra.mxu0 0.0
        %986 = vmatprep.subr.mxu0 0.0
        %987 = vmatpush1.msra.mxu0 0.0
        %988 = vmatprep.subr.mxu0 0.0
        %989 = vmatpush1.msra.mxu0 0.0
        %990 = vmatprep.subr.mxu0 0.0
        %991 = vmatpush1.msra.mxu0 0.0
        %992 = vmatprep.subr.mxu0 0.0
        %993 = vmatpush1.msra.mxu0 0.0
        %994 = vmatprep.subr.mxu0 0.0
        %995 = vmatpush1.msra.mxu0 0.0
        %996 = vmatprep.subr.mxu0 0.0
        %997 = vmatpush1.msra.mxu0 0.0
        %998 = vmatprep.subr.mxu0 0.0
        %999 = vmatpush1.msra.mxu0 0.0
        %1000 = vmatprep.subr.mxu0 0.0
        %1001 = vmatpush1.msra.mxu0 0.0
        %1002 = vmatprep.subr.mxu0 0.0
        %1003 = vmatpush1.msra.mxu0 0.0
        %1004 = vmatprep.subr.mxu0 0.0
        %1005 = vmatpush1.msra.mxu0 0.0
        %1006 = vmatprep.mubr.f32.mxu0 0.0
        %1007 = vmatmul.mubr.f32.gmra.mrb[0].mxu0 %v553
        %v1008 = vpop.f32.mrb[0].mxu0
        %v1009 = vadd.f32 %v940, %v1008
        %v1010 = vpop.f32.mrb[0].mxu0
        %1011 = vmatprep.mubr.f32.mxu0 0.0
        %1012 = vmatmul.mubr.f32.gmra.mrb[0].mxu0 %v556
        %v1013 = vpop.f32.mrb[0].mxu0
        %v1014 = vadd.f32 %v941, %v1013
        %v1015 = vpop.f32.mrb[0].mxu0
        %1016 = vdwg.mxu0
        %s1017 = sld [smem:[#allocation11 + $0x2]]
        %v1018 = vstv %s1017
        %v1019 = vadd.f32 %v1009, %v1018
        %v1020 = vadd.f32 %v1014, %v1018
        %s1021 = scalar_lea.vmem %s421, 32 [#allocation12]
        %1022 = vst.msk [vmem:[%s1021] sm:$0xff] %vm637, %v1019
        %1023 = vst.msk [vmem:[%s1021 + $0x8] sm:$0xff] %vm637, %v1020
        %s1024 = sld [smem:[#allocation8 + $0x180]]
        %v1025 = vstv %s1024
        %v1026 = vmul.f32 %v1025, %v424
        %s1027 = sld [smem:[#allocation8 + $0x181]]
        %v1028 = vstv %s1027
        %v1029 = vmul.f32 %v1028, %v425
        %v1030 = vadd.f32 %v1026, %v1029
        %s1031 = sld [smem:[#allocation8 + $0x182]]
        %v1032 = vstv %s1031
        %v1033 = vmul.f32 %v1032, %v426
        %v1034 = vadd.f32 %v1030, %v1033
        %s1035 = sld [smem:[#allocation8 + $0x183]]
        %v1036 = vstv %s1035
        %v1037 = vmul.f32 %v1036, %v427
        %v1038 = vadd.f32 %v1034, %v1037
        %v1040 = vsel %vm455, %v1038, 0
        %1042 = vmatprep.subr.mxu0 0.0
        %1043 = vmatpush1.msra.mxu0 %v436
        %1044 = vmatprep.subr.mxu0 0.0
        %1045 = vmatpush1.msra.mxu0 %v437
        %1046 = vmatprep.subr.mxu0 0.0
        %1047 = vmatpush1.msra.mxu0 0.0
        %1048 = vmatprep.subr.mxu0 0.0
        %1049 = vmatpush1.msra.mxu0 0.0
        %1050 = vmatprep.subr.mxu0 0.0
        %1051 = vmatpush1.msra.mxu0 0.0
        %1052 = vmatprep.subr.mxu0 0.0
        %1053 = vmatpush1.msra.mxu0 0.0
        %1054 = vmatprep.subr.mxu0 0.0
        %1055 = vmatpush1.msra.mxu0 0.0
        %1056 = vmatprep.subr.mxu0 0.0
        %1057 = vmatpush1.msra.mxu0 0.0
        %1058 = vmatprep.subr.mxu0 0.0
        %1059 = vmatpush1.msra.mxu0 0.0
        %1060 = vmatprep.subr.mxu0 0.0
        %1061 = vmatpush1.msra.mxu0 0.0
        %1062 = vmatprep.subr.mxu0 0.0
        %1063 = vmatpush1.msra.mxu0 0.0
        %1064 = vmatprep.subr.mxu0 0.0
        %1065 = vmatpush1.msra.mxu0 0.0
        %1066 = vmatprep.subr.mxu0 0.0
        %1067 = vmatpush1.msra.mxu0 0.0
        %1068 = vmatprep.subr.mxu0 0.0
        %1069 = vmatpush1.msra.mxu0 0.0
        %1070 = vmatprep.subr.mxu0 0.0
        %1071 = vmatpush1.msra.mxu0 0.0
        %1072 = vmatprep.subr.mxu0 0.0
        %1073 = vmatpush1.msra.mxu0 0.0
        %1074 = vmatprep.subr.mxu0 0.0
        %1075 = vmatpush1.msra.mxu0 0.0
        %1076 = vmatprep.subr.mxu0 0.0
        %1077 = vmatpush1.msra.mxu0 0.0
        %1078 = vmatprep.subr.mxu0 0.0
        %1079 = vmatpush1.msra.mxu0 0.0
        %1080 = vmatprep.subr.mxu0 0.0
        %1081 = vmatpush1.msra.mxu0 0.0
        %1082 = vmatprep.subr.mxu0 0.0
        %1083 = vmatpush1.msra.mxu0 0.0
        %1084 = vmatprep.subr.mxu0 0.0
        %1085 = vmatpush1.msra.mxu0 0.0
        %1086 = vmatprep.subr.mxu0 0.0
        %1087 = vmatpush1.msra.mxu0 0.0
        %1088 = vmatprep.subr.mxu0 0.0
        %1089 = vmatpush1.msra.mxu0 0.0
        %1090 = vmatprep.subr.mxu0 0.0
        %1091 = vmatpush1.msra.mxu0 0.0
        %1092 = vmatprep.subr.mxu0 0.0
        %1093 = vmatpush1.msra.mxu0 0.0
        %1094 = vmatprep.subr.mxu0 0.0
        %1095 = vmatpush1.msra.mxu0 0.0
        %1096 = vmatprep.subr.mxu0 0.0
        %1097 = vmatpush1.msra.mxu0 0.0
        %1098 = vmatprep.subr.mxu0 0.0
        %1099 = vmatpush1.msra.mxu0 0.0
        %1100 = vmatprep.subr.mxu0 0.0
        %1101 = vmatpush1.msra.mxu0 0.0
        %1102 = vmatprep.subr.mxu0 0.0
        %1103 = vmatpush1.msra.mxu0 0.0
        %1104 = vmatprep.subr.mxu0 0.0
        %1105 = vmatpush1.msra.mxu0 0.0
        %1106 = vmatprep.mubr.f32.mxu0 0.0
        %1107 = vmatmul.mubr.f32.gmra.mrb[0].mxu0 %v1040
        %v1108 = vpop.f32.mrb[0].mxu0
        %v1109 = vadd.f32 0.0, %v1108
        %v1110 = vpop.f32.mrb[0].mxu0
        %1111 = vdwg.mxu0
        %s1112 = sld [smem:[#allocation9 + $0x180]]
        %v1113 = vstv %s1112
        %v1114 = vmul.f32 %v1113, %v428
        %v1115 = vmul.f32 %v1113, %v429
        %s1116 = sld [smem:[#allocation9 + $0x181]]
        %v1117 = vstv %s1116
        %v1118 = vmul.f32 %v1117, %v430
        %v1119 = vmul.f32 %v1117, %v431
        %v1120 = vadd.f32 %v1114, %v1118
        %v1121 = vadd.f32 %v1115, %v1119
        %s1122 = sld [smem:[#allocation9 + $0x182]]
        %v1123 = vstv %s1122
        %v1124 = vmul.f32 %v1123, %v432
        %v1125 = vmul.f32 %v1123, %v433
        %v1126 = vadd.f32 %v1120, %v1124
        %v1127 = vadd.f32 %v1121, %v1125
        %s1128 = sld [smem:[#allocation9 + $0x183]]
        %v1129 = vstv %s1128
        %v1130 = vmul.f32 %v1129, %v434
        %v1131 = vmul.f32 %v1129, %v435
        %v1132 = vadd.f32 %v1126, %v1130
        %v1133 = vadd.f32 %v1127, %v1131
        %1134 = vmatprep.subr.mxu0 0.0
        %1135 = vmatpush1.msra.mxu0 %v1109
        %1136 = vmatprep.subr.mxu0 0.0
        %1137 = vmatpush1.msra.mxu0 0.0
        %1138 = vmatprep.subr.mxu0 0.0
        %1139 = vmatpush1.msra.mxu0 0.0
        %1140 = vmatprep.subr.mxu0 0.0
        %1141 = vmatpush1.msra.mxu0 0.0
        %1142 = vmatprep.subr.mxu0 0.0
        %1143 = vmatpush1.msra.mxu0 0.0
        %1144 = vmatprep.subr.mxu0 0.0
        %1145 = vmatpush1.msra.mxu0 0.0
        %1146 = vmatprep.subr.mxu0 0.0
        %1147 = vmatpush1.msra.mxu0 0.0
        %1148 = vmatprep.subr.mxu0 0.0
        %1149 = vmatpush1.msra.mxu0 0.0
        %1150 = vmatprep.subr.mxu0 0.0
        %1151 = vmatpush1.msra.mxu0 0.0
        %1152 = vmatprep.subr.mxu0 0.0
        %1153 = vmatpush1.msra.mxu0 0.0
        %1154 = vmatprep.subr.mxu0 0.0
        %1155 = vmatpush1.msra.mxu0 0.0
        %1156 = vmatprep.subr.mxu0 0.0
        %1157 = vmatpush1.msra.mxu0 0.0
        %1158 = vmatprep.subr.mxu0 0.0
        %1159 = vmatpush1.msra.mxu0 0.0
        %1160 = vmatprep.subr.mxu0 0.0
        %1161 = vmatpush1.msra.mxu0 0.0
        %1162 = vmatprep.subr.mxu0 0.0
        %1163 = vmatpush1.msra.mxu0 0.0
        %1164 = vmatprep.subr.mxu0 0.0
        %1165 = vmatpush1.msra.mxu0 0.0
        %1166 = vmatprep.subr.mxu0 0.0
        %1167 = vmatpush1.msra.mxu0 0.0
        %1168 = vmatprep.subr.mxu0 0.0
        %1169 = vmatpush1.msra.mxu0 0.0
        %1170 = vmatprep.subr.mxu0 0.0
        %1171 = vmatpush1.msra.mxu0 0.0
        %1172 = vmatprep.subr.mxu0 0.0
        %1173 = vmatpush1.msra.mxu0 0.0
        %1174 = vmatprep.subr.mxu0 0.0
        %1175 = vmatpush1.msra.mxu0 0.0
        %1176 = vmatprep.subr.mxu0 0.0
        %1177 = vmatpush1.msra.mxu0 0.0
        %1178 = vmatprep.subr.mxu0 0.0
        %1179 = vmatpush1.msra.mxu0 0.0
        %1180 = vmatprep.subr.mxu0 0.0
        %1181 = vmatpush1.msra.mxu0 0.0
        %1182 = vmatprep.subr.mxu0 0.0
        %1183 = vmatpush1.msra.mxu0 0.0
        %1184 = vmatprep.subr.mxu0 0.0
        %1185 = vmatpush1.msra.mxu0 0.0
        %1186 = vmatprep.subr.mxu0 0.0
        %1187 = vmatpush1.msra.mxu0 0.0
        %1188 = vmatprep.subr.mxu0 0.0
        %1189 = vmatpush1.msra.mxu0 0.0
        %1190 = vmatprep.subr.mxu0 0.0
        %1191 = vmatpush1.msra.mxu0 0.0
        %1192 = vmatprep.subr.mxu0 0.0
        %1193 = vmatpush1.msra.mxu0 0.0
        %1194 = vmatprep.subr.mxu0 0.0
        %1195 = vmatpush1.msra.mxu0 0.0
        %1196 = vmatprep.subr.mxu0 0.0
        %1197 = vmatpush1.msra.mxu0 0.0
        %1198 = vmatprep.mubr.f32.mxu0 0.0
        %1199 = vmatmul.mubr.f32.gmra.mrb[0].mxu0 %v553
        %v1200 = vpop.f32.mrb[0].mxu0
        %v1201 = vadd.f32 %v1132, %v1200
        %v1202 = vpop.f32.mrb[0].mxu0
        %1203 = vmatprep.mubr.f32.mxu0 0.0
        %1204 = vmatmul.mubr.f32.gmra.mrb[0].mxu0 %v556
        %v1205 = vpop.f32.mrb[0].mxu0
        %v1206 = vadd.f32 %v1133, %v1205
        %v1207 = vpop.f32.mrb[0].mxu0
        %1208 = vdwg.mxu0
        %s1209 = sld [smem:[#allocation11 + $0x3]]
        %v1210 = vstv %s1209
        %v1211 = vadd.f32 %v1201, %v1210
        %v1212 = vadd.f32 %v1206, %v1210
        %s1213 = scalar_lea.vmem %s421, 48 [#allocation12]
        %1214 = vst.msk [vmem:[%s1213] sm:$0xff] %vm637, %v1211
        %1215 = vst.msk [vmem:[%s1213 + $0x8] sm:$0xff] %vm637, %v1212
        %s1216 = sand.u32 %s212, 1
        %s1217 = scalar_lea.sflag [#allocation4], %s1216
        %s1218 = sand.u32 %s212, 1
        %s1219 = smul.addr %s1218, 64
        %s1220 = scalar_lea.vmem [#allocation12], %s1219
        // Predicated region
        $region69: #{tpu_custom_call.1} parent=47 // pred_check
          %p1221 = pneg %p222
        $region70: #{tpu_custom_call.1} parent=47 // pred_check_branch
          %1223 = sbr.rel (%p1221) target = $region72
        $region71: #{tpu_custom_call.1} parent=47 // pred_region
          #allocation16 [shape = 'u32[6]{0}', space=smem, size = 0x18, scoped, tag = 'DMA stride descriptor']
          %s1224 = smul.u32 2, %s34
          %s1226 = ssub.s32 1024, 1024
          %1227 = vsyncadd %s1217, %s1226
          %s1228 = smul.addr %s33, 16
          %s1229 = sadd.s32 %s1224, %s1228
          %s1230 = smul.addr %s1229, 128
          %s1231 = scalar_lea.hbm %s7, %s1230
          %s1233 = sshll.u32 1, 14
          %s1234 = sxor.u32 4294967295, %s1233
          %s1237 = sshll.u32 7, 18
          %s1238 = sxor.u32 4294967295, %s1237
          %s1239 = sand.u32 0, %s1238
          %s1241 = sor.u32 %s1239, 0
          %s1243 = sshll.u32 3, 24
          %s1244 = sxor.u32 4294967295, %s1243
          %s1245 = sand.u32 %s1241, %s1244
          %s1247 = sor.u32 %s1245, 0
          %s1248 = sshll.u32 %s1220, 4
          %s1249 = int_to_ptr.vmem [resolvable:$true] %s1248
          %1255 = sst [smem:[#allocation16]] 256
          %s1256 = scalar_lea.smem [#allocation16], 1
          %1257 = sst [smem:[%s1256]] 512
          %s1258 = scalar_lea.smem [#allocation16], 2
          %1259 = sst [smem:[%s1258]] 2
          %s1260 = scalar_lea.smem [#allocation16], 3
          %1261 = sst [smem:[%s1260]] 128
          %s1262 = scalar_lea.smem [#allocation16], 4
          %1263 = sst [smem:[%s1262]] 128
          %s1264 = scalar_lea.smem [#allocation16], 5
          %1265 = sst [smem:[%s1264]] 8
          %1267 = dma.general %s1249, 1024, %s1231, %s1217, [#allocation15], [#allocation16], %s1247, 0
        $region72: #{tpu_custom_call.1} parent=47 // pred_fallthru
          _
      $region48: #{tpu_custom_call.1} parent=5 // pred_fallthru
        _
      %p1268 = scmp.le.s32.totalorder 2, %s24
      // Predicated region
      $region73: #{tpu_custom_call.1} parent=5 // pred_check
        %p1269 = pneg %p1268
      $region74: #{tpu_custom_call.1} parent=5 // pred_check_branch
        %1271 = sbr.rel (%p1269) target = $region76
      $region75: #{tpu_custom_call.1} parent=5 // pred_region
        %s1272 = ssub.s32 %s24, 2
        // Predicated region
        $region77: #{tpu_custom_call.1} parent=75 // pred_check
          %p1273 = pneg %p228
        $region78: #{tpu_custom_call.1} parent=75 // pred_check_branch
          %1275 = sbr.rel (%p1273) target = $region80
        $region79: #{tpu_custom_call.1} parent=75 // pred_region
          %s1276 = sand.u32 %s213, 1
          %s1277 = scalar_lea.sflag [#allocation4], %s1276
          %s1278 = sand.u32 %s213, 1
          %s1279 = smul.addr %s1278, 64
          %s1280 = scalar_lea.vmem [#allocation12], %s1279
          %1281 = dma.done %s1277, 1024
        $region80: #{tpu_custom_call.1} parent=75 // pred_fallthru
          _
      $region76: #{tpu_custom_call.1} parent=5 // pred_fallthru
        _
    $region6: #{tpu_custom_call.1} parent=1 // loop_footer
      %s28 = sadd.s32 1, %s24
    $region7: #{tpu_custom_call.1} parent=1 // loop_footer_branch
      %23 = sbr.rel target = $region3
    $region8: #{tpu_custom_call.1} parent=1 // loop_exit
      _
    %1282 = vsyncpa [#allocation3], 1
    %s1283 = scalar_lea.sflag [#allocation3], 1
    %1284 = vsyncpa %s1283, 1
    %1285 = vsyncpa [#allocation7], 1
    %s1286 = scalar_lea.sflag [#allocation7], 1
    %1287 = vsyncpa %s1286, 1
    %1288 = vsyncpa [#allocation4], 1
    %s1289 = scalar_lea.sflag [#allocation4], 1
    %1290 = vsyncpa %s1289, 1
    %1291 = vsyncpa [#allocation5], 1
    %s1292 = scalar_lea.sflag [#allocation5], 1
    %1293 = vsyncpa %s1292, 1
    %1294 = vsyncpa [#allocation10], 1

</llo_original>
